<compile_context>
chip_gen: v5e
topology: v5e:2x2
jax: 0.10.0
libtpu: 0.0.40
codegen_flags: <defaults>
</compile_context>

<pallas_src>
import functools
import math

import jax
import jax.numpy as jnp
from jax.experimental import pallas as pl
from jax.experimental.pallas import tpu as pltpu

_EPS = 1e-12
_LANE = 128          # lanes per vreg
_CHUNK_ROWS = 8      # sublane rows per inner chunk -> 8*128 = 1024 Gaussians
_CHUNK = _CHUNK_ROWS * _LANE


def _round_up(x, m):
    return (x + m - 1) // m * m


def _gaussian_fwd_kernel(const_ref, g_ref, out_ref):
    """Fused refract + activations over one lane-dense block.

    const_ref : SMEM (8,) f32  [cam_x, cam_y, cam_z, n_x, n_y, n_z, numer, pad]
                n = plane_n / ||plane_n||, numer = dot(plane_p - cam, n)
    g_ref     : VMEM (12, R, 128) f32 packed inputs
                rows 0:3 position xyz, 3:6 log-scale xyz, 6:10 rotation quat,
                row 10 eta, row 11 opacity logit
    out_ref   : VMEM (11, R, 128) f32 packed outputs
                rows 0:3 warped means3D, 3 sigmoid(opacity), 4:7 exp(scale),
                rows 7:11 normalized rotation
    """
    cam_x = const_ref[0]
    cam_y = const_ref[1]
    cam_z = const_ref[2]
    nx = const_ref[3]
    ny = const_ref[4]
    nz = const_ref[5]
    numer = const_ref[6]          # dot(plane_p - cam, n), per-frame constant

    rows = g_ref.shape[1]
    num_chunks = rows // _CHUNK_ROWS

    # Statically unrolled walk over 8x128 chunks: one vreg per live value, so
    # even very large DMA blocks never spill vregs to VMEM.
    for c in range(num_chunks):
        lo, hi = c * _CHUNK_ROWS, (c + 1) * _CHUNK_ROWS

        # ---------------- refract(points, cam, plane_p, plane_n, eta) -------
        px = g_ref[0, lo:hi, :]
        py = g_ref[1, lo:hi, :]
        pz = g_ref[2, lo:hi, :]
        eta = g_ref[10, lo:hi, :]

        vx = px - cam_x
        vy = py - cam_y
        vz = pz - cam_z
        inv_vlen = jax.lax.rsqrt(vx * vx + vy * vy + vz * vz + _EPS)   # EUP
        vnx = vx * inv_vlen
        vny = vy * inv_vlen
        vnz = vz * inv_vlen

        cos_i = -(vnx * nx + vny * ny + vnz * nz)
        sin_t2 = eta * eta * (1.0 - cos_i * cos_i)
        tir = sin_t2 > 1.0
        cos_t = jnp.sqrt(jnp.maximum(1.0 - sin_t2, 0.0))
        kk = eta * cos_i - cos_t
        rfx = jnp.where(tir, vnx, eta * vnx + kk * nx)
        rfy = jnp.where(tir, vny, eta * vny + kk * ny)
        rfz = jnp.where(tir, vnz, eta * vnz + kk * nz)

        denom = jnp.maximum(rfx * nx + rfy * ny + rfz * nz, 1e-6)
        t = numer * pl.reciprocal(denom, approx=True)                  # EUP

        out_ref[0, lo:hi, :] = cam_x + rfx * t
        out_ref[1, lo:hi, :] = cam_y + rfy * t
        out_ref[2, lo:hi, :] = cam_z + rfz * t

        # ---------------- activations ---------------------------------------
        out_ref[3, lo:hi, :] = jax.nn.sigmoid(g_ref[11, lo:hi, :])
        out_ref[4, lo:hi, :] = jnp.exp(g_ref[3, lo:hi, :])
        out_ref[5, lo:hi, :] = jnp.exp(g_ref[4, lo:hi, :])
        out_ref[6, lo:hi, :] = jnp.exp(g_ref[5, lo:hi, :])

        r0 = g_ref[6, lo:hi, :]
        r1 = g_ref[7, lo:hi, :]
        r2 = g_ref[8, lo:hi, :]
        r3 = g_ref[9, lo:hi, :]
        inv_rlen = jax.lax.rsqrt(r0 * r0 + r1 * r1 + r2 * r2 + r3 * r3 + _EPS)
        out_ref[7, lo:hi, :] = r0 * inv_rlen
        out_ref[8, lo:hi, :] = r1 * inv_rlen
        out_ref[9, lo:hi, :] = r2 * inv_rlen
        out_ref[10, lo:hi, :] = r3 * inv_rlen


@functools.partial(jax.jit, static_argnames=("tile_n",))
def gaussian_forward_pallas(positions, etas, scales, rotations, opacities,
                            cam_pos, plane_p, plane_n, *, tile_n=16384):
    """Returns (warped_means3D, opacities_act, scales_act, rotations_act).

    Accepts the module's native (N, C) layout; the transpose/pack/slice steps
    around the pallas_call are layout plumbing (a production pipeline would
    store the Gaussian parameters in the lane-dense layout directly).
    tile_n = Gaussians per grid step; must be a multiple of 1024.
    """
    if tile_n % _CHUNK != 0:
        raise ValueError("tile_n must be a multiple of %d" % _CHUNK)
    N = positions.shape[0]
    f32 = jnp.float32

    # ---- per-frame scalar constants (computed once, not per grid step) -----
    cam_pos = cam_pos.astype(f32).reshape(3)
    plane_p = plane_p.astype(f32).reshape(3)
    plane_n = plane_n.astype(f32).reshape(3)
    n = plane_n / jnp.sqrt(jnp.sum(plane_n * plane_n))
    numer = jnp.sum((plane_p - cam_pos) * n)
    consts = jnp.concatenate(
        [cam_pos, n, jnp.reshape(numer, (1,)), jnp.zeros((1,), f32)]
    ).astype(f32)                                                    # (8,)

    # ---- lane-dense packed input slab: (12, N) -> pad -> (12, R, 128) ------
    packed = jnp.concatenate(
        [positions.T, scales.T, rotations.T, etas.T, opacities.T],
        axis=0).astype(f32)                                          # (12, N)

    n_pad = _round_up(N, _CHUNK)
    if n_pad > tile_n:
        tile = tile_n
        n_pad = _round_up(N, tile)
    else:
        tile = n_pad                  # single block for small N
    if n_pad != N:
        packed = jnp.pad(packed, ((0, 0), (0, n_pad - N)))           # zeros: safe

    rows_total = n_pad // _LANE
    rows_block = tile // _LANE
    packed = packed.reshape(12, rows_total, _LANE)
    grid = (n_pad // tile,)

    out = pl.pallas_call(
        _gaussian_fwd_kernel,
        out_shape=jax.ShapeDtypeStruct((11, rows_total, _LANE), f32),
        grid=grid,
        in_specs=[
            # 8 per-frame scalars live in SMEM (no per-step vector traffic).
            pl.BlockSpec(memory_space=pltpu.MemorySpace.SMEM),
            # single wide input stream
            pl.BlockSpec((12, rows_block, _LANE), lambda i: (0, i, 0)),
        ],
        # single wide, lane-dense output stream
        out_specs=pl.BlockSpec((11, rows_block, _LANE), lambda i: (0, i, 0)),
        compiler_params=pltpu.CompilerParams(
            dimension_semantics=("parallel",),          # megacore-shardable
            vmem_limit_bytes=32 * 1024 * 1024),         # safe on v5e/v6e/v7x
    )(consts, packed)

    flat = out.reshape(11, n_pad)
    warped = flat[0:3, :N].T
    opac_act = flat[3:4, :N].T
    scale_act = flat[4:7, :N].T
    rot_act = flat[7:11, :N].T
    return warped, opac_act, scale_act, rot_act


# ---------------- pure-JAX reference (mirrors the PyTorch code) -------------
def _ref_forward(positions, etas, scales, rotations, opacities,
                 cam_pos, plane_p, plane_n):
    eps = 1e-12
    n = plane_n / jnp.linalg.norm(plane_n)
    v = positions - cam_pos
    v_norm = v / jnp.maximum(jnp.linalg.norm(v, axis=-1, keepdims=True), eps)
    cos_i = -jnp.sum(v_norm * n, axis=-1, keepdims=True)
    sin_t2 = etas ** 2 * (1 - cos_i ** 2)
    tir = sin_t2 > 1.0
    cos_t = jnp.sqrt(jnp.clip(1 - sin_t2, 0.0))
    refr = etas * v_norm + (etas * cos_i - cos_t) * n
    refr = jnp.where(tir, v_norm, refr)
    denom = jnp.clip(jnp.sum(refr * n, axis=-1, keepdims=True), 1e-06)
    t = jnp.sum((plane_p - cam_pos) * n) / denom
    warped = cam_pos + refr * t
    opac = jax.nn.sigmoid(opacities)
    scl = jnp.exp(scales)
    rot = rotations / jnp.maximum(
        jnp.linalg.norm(rotations, axis=-1, keepdims=True), eps)
    return warped, opac, scl, rot


if __name__ == "__main__":
    key = jax.random.PRNGKey(0)
    N = 3000              # small; NOT a multiple of the tile -> exercises padding
    sh_degree = 4
    n_sh = (sh_degree + 1) ** 2

    k = jax.random.split(key, 8)
    positions = jax.random.normal(k[0], (N, 3), jnp.float32) * 2.0
    positions = positions.at[:, 2].add(5.0)                 # in front of the plane
    sh_coefficients = jax.random.normal(k[1], (N, n_sh, 3), jnp.float32) * 0.1
    rotations = jax.random.normal(k[2], (N, 4), jnp.float32)
    scales = jax.random.normal(k[3], (N, 3), jnp.float32) * 0.3 - 2.0
    opacities = jax.random.normal(k[4], (N, 1), jnp.float32)
    etas = jnp.full((N, 1), 1.0 / 1.33, jnp.float32)

    cam_pos = jnp.array([0.0, 0.0, -3.0], jnp.float32)      # camera center
    plane_p = jnp.array([0.0, 0.0, 0.0], jnp.float32)       # buffer plane_p
    plane_n = jnp.array([0.0, 0.0, 1.0], jnp.float32)       # buffer plane_n

    # forward-pass glue, as in the module (rasterizer settings / means2D)
    viewspace_points = jnp.zeros_like(positions)             # means2D placeholder
    tan_fov_x = math.tan(1.2 * 0.5)
    tan_fov_y = math.tan(0.9 * 0.5)

    # tile_n=2048 in the demo so the tiny problem still exercises a multi-step
    # grid (2 steps -> both v7x TensorCores) and the multi-chunk inner walk.
    # Production-scale N should use the default tile_n=16384 (or larger).
    warped, opac_act, scale_act, rot_act = jax.block_until_ready(
        gaussian_forward_pallas(positions, etas, scales, rotations, opacities,
                                cam_pos, plane_p, plane_n, tile_n=2048))

    # TODO(synk): the CUDA GaussianRasterizer (tile-based splatting) has no clean
    # Pallas equivalent; warped/opac_act/scale_act/rot_act + sh_coefficients are
    # exactly the tensors that would be handed to it.

    w_ref, o_ref, s_ref, r_ref = _ref_forward(
        positions, etas, scales, rotations, opacities, cam_pos, plane_p, plane_n)

    # warped is compared in relative terms: t = numer/denom goes through the
    # EUP approximate reciprocal (pl.reciprocal(approx=True)), which is a
    # relative-error approximation, and the clamped denom makes |warped| large.
    assert jnp.allclose(warped, w_ref, rtol=5e-3, atol=1e-2), "warped mismatch"
    assert jnp.allclose(opac_act, o_ref, atol=1e-6), "opacity mismatch"
    assert jnp.allclose(scale_act, s_ref, atol=1e-5, rtol=1e-5), "scale mismatch"
    assert jnp.allclose(rot_act, r_ref, atol=1e-6), "rotation mismatch"

    print("KERNEL_OK")
</pallas_src>

<mosaic_0001>
module attributes {stable_mosaic.version = 11 : i64} {
  func.func @_gaussian_fwd_kernel(%arg0: i32, %arg1: memref<8xf32, #tpu.memory_space<smem>>, %arg2: memref<12x16x128xf32, #tpu.memory_space<vmem>>, %arg3: memref<11x16x128xf32, #tpu.memory_space<vmem>>) attributes {dimension_semantics = [#tpu.dimension_semantics<parallel>], iteration_bounds = array<i64: 2>, scalar_prefetch = 0 : i64, scratch_operands = 0 : i64, tpu.core_type = #tpu.core_type<tc>, window_params = [{transform_indices = @transform_0, window_bounds = array<i64: 8>}, {transform_indices = @transform_1, window_bounds = array<i64: 12, 16, 128>}, {transform_indices = @transform_2, window_bounds = array<i64: 11, 16, 128>}]} {
    %c0 = arith.constant 0 : index
    %0 = memref.load %arg1[%c0] : memref<8xf32, #tpu.memory_space<smem>>
    %c1 = arith.constant 1 : index
    %1 = memref.load %arg1[%c1] : memref<8xf32, #tpu.memory_space<smem>>
    %c2 = arith.constant 2 : index
    %2 = memref.load %arg1[%c2] : memref<8xf32, #tpu.memory_space<smem>>
    %c3 = arith.constant 3 : index
    %3 = memref.load %arg1[%c3] : memref<8xf32, #tpu.memory_space<smem>>
    %c4 = arith.constant 4 : index
    %4 = memref.load %arg1[%c4] : memref<8xf32, #tpu.memory_space<smem>>
    %c5 = arith.constant 5 : index
    %5 = memref.load %arg1[%c5] : memref<8xf32, #tpu.memory_space<smem>>
    %c6 = arith.constant 6 : index
    %6 = memref.load %arg1[%c6] : memref<8xf32, #tpu.memory_space<smem>>
    %c0_0 = arith.constant 0 : index
    %c0_1 = arith.constant 0 : index
    %c0_2 = arith.constant 0 : index
    %7 = vector.load %arg2[%c0_0, %c0_1, %c0_2] : memref<12x16x128xf32, #tpu.memory_space<vmem>>, vector<1x8x128xf32>
    %8 = vector.shape_cast %7 : vector<1x8x128xf32> to vector<8x128xf32>
    %c1_3 = arith.constant 1 : index
    %c0_4 = arith.constant 0 : index
    %c0_5 = arith.constant 0 : index
    %9 = vector.load %arg2[%c1_3, %c0_4, %c0_5] : memref<12x16x128xf32, #tpu.memory_space<vmem>>, vector<1x8x128xf32>
    %10 = vector.shape_cast %9 : vector<1x8x128xf32> to vector<8x128xf32>
    %c2_6 = arith.constant 2 : index
    %c0_7 = arith.constant 0 : index
    %c0_8 = arith.constant 0 : index
    %11 = vector.load %arg2[%c2_6, %c0_7, %c0_8] : memref<12x16x128xf32, #tpu.memory_space<vmem>>, vector<1x8x128xf32>
    %12 = vector.shape_cast %11 : vector<1x8x128xf32> to vector<8x128xf32>
    %c10 = arith.constant 10 : index
    %c0_9 = arith.constant 0 : index
    %c0_10 = arith.constant 0 : index
    %13 = vector.load %arg2[%c10, %c0_9, %c0_10] : memref<12x16x128xf32, #tpu.memory_space<vmem>>, vector<1x8x128xf32>
    %14 = vector.shape_cast %13 : vector<1x8x128xf32> to vector<8x128xf32>
    %15 = vector.broadcast %0 : f32 to vector<8x128xf32>
    %16 = arith.subf %8, %15 : vector<8x128xf32>
    %17 = vector.broadcast %1 : f32 to vector<8x128xf32>
    %18 = arith.subf %10, %17 : vector<8x128xf32>
    %19 = vector.broadcast %2 : f32 to vector<8x128xf32>
    %20 = arith.subf %12, %19 : vector<8x128xf32>
    %21 = arith.mulf %16, %16 : vector<8x128xf32>
    %22 = arith.mulf %18, %18 : vector<8x128xf32>
    %23 = arith.addf %21, %22 : vector<8x128xf32>
    %24 = arith.mulf %20, %20 : vector<8x128xf32>
    %25 = arith.addf %23, %24 : vector<8x128xf32>
    %cst = arith.constant 9.99999996E-13 : f32
    %26 = vector.broadcast %cst : f32 to vector<8x128xf32>
    %27 = arith.addf %25, %26 : vector<8x128xf32>
    %28 = math.rsqrt %27 : vector<8x128xf32>
    %29 = arith.mulf %16, %28 : vector<8x128xf32>
    %30 = arith.mulf %18, %28 : vector<8x128xf32>
    %31 = arith.mulf %20, %28 : vector<8x128xf32>
    %32 = vector.broadcast %3 : f32 to vector<8x128xf32>
    %33 = arith.mulf %29, %32 : vector<8x128xf32>
    %34 = vector.broadcast %4 : f32 to vector<8x128xf32>
    %35 = arith.mulf %30, %34 : vector<8x128xf32>
    %36 = arith.addf %33, %35 : vector<8x128xf32>
    %37 = vector.broadcast %5 : f32 to vector<8x128xf32>
    %38 = arith.mulf %31, %37 : vector<8x128xf32>
    %39 = arith.addf %36, %38 : vector<8x128xf32>
    %cst_11 = arith.constant 0.000000e+00 : f32
    %40 = vector.broadcast %cst_11 : f32 to vector<8x128xf32>
    %41 = arith.subf %40, %39 : vector<8x128xf32>
    %42 = arith.mulf %14, %14 : vector<8x128xf32>
    %43 = arith.mulf %41, %41 : vector<8x128xf32>
    %cst_12 = arith.constant 1.000000e+00 : f32
    %44 = vector.broadcast %cst_12 : f32 to vector<8x128xf32>
    %45 = arith.subf %44, %43 : vector<8x128xf32>
    %46 = arith.mulf %42, %45 : vector<8x128xf32>
    %cst_13 = arith.constant 1.000000e+00 : f32
    %47 = vector.broadcast %cst_13 : f32 to vector<8x128xf32>
    %48 = arith.cmpf ogt, %46, %47 : vector<8x128xf32>
    %cst_14 = arith.constant 1.000000e+00 : f32
    %49 = vector.broadcast %cst_14 : f32 to vector<8x128xf32>
    %50 = arith.subf %49, %46 : vector<8x128xf32>
    %cst_15 = arith.constant 0.000000e+00 : f32
    %51 = vector.broadcast %cst_15 : f32 to vector<8x128xf32>
    %52 = arith.maximumf %50, %51 : vector<8x128xf32>
    %53 = math.sqrt %52 : vector<8x128xf32>
    %54 = arith.mulf %14, %41 : vector<8x128xf32>
    %55 = arith.subf %54, %53 : vector<8x128xf32>
    %56 = arith.mulf %14, %29 : vector<8x128xf32>
    %57 = vector.broadcast %3 : f32 to vector<8x128xf32>
    %58 = arith.mulf %55, %57 : vector<8x128xf32>
    %59 = arith.addf %56, %58 : vector<8x128xf32>
    %60 = arith.select %48, %29, %59 : vector<8x128xi1>, vector<8x128xf32>
    %61 = arith.mulf %14, %30 : vector<8x128xf32>
    %62 = vector.broadcast %4 : f32 to vector<8x128xf32>
    %63 = arith.mulf %55, %62 : vector<8x128xf32>
    %64 = arith.addf %61, %63 : vector<8x128xf32>
    %65 = arith.select %48, %30, %64 : vector<8x128xi1>, vector<8x128xf32>
    %66 = arith.mulf %14, %31 : vector<8x128xf32>
    %67 = vector.broadcast %5 : f32 to vector<8x128xf32>
    %68 = arith.mulf %55, %67 : vector<8x128xf32>
    %69 = arith.addf %66, %68 : vector<8x128xf32>
    %70 = arith.select %48, %31, %69 : vector<8x128xi1>, vector<8x128xf32>
    %71 = vector.broadcast %3 : f32 to vector<8x128xf32>
    %72 = arith.mulf %60, %71 : vector<8x128xf32>
    %73 = vector.broadcast %4 : f32 to vector<8x128xf32>
    %74 = arith.mulf %65, %73 : vector<8x128xf32>
    %75 = arith.addf %72, %74 : vector<8x128xf32>
    %76 = vector.broadcast %5 : f32 to vector<8x128xf32>
    %77 = arith.mulf %70, %76 : vector<8x128xf32>
    %78 = arith.addf %75, %77 : vector<8x128xf32>
    %cst_16 = arith.constant 9.99999997E-7 : f32
    %79 = vector.broadcast %cst_16 : f32 to vector<8x128xf32>
    %80 = arith.maximumf %78, %79 : vector<8x128xf32>
    %81 = tpu.reciprocal %80 {approx = true} : vector<8x128xf32> -> vector<8x128xf32>
    %82 = vector.broadcast %6 : f32 to vector<8x128xf32>
    %83 = arith.mulf %82, %81 : vector<8x128xf32>
    %84 = arith.mulf %60, %83 : vector<8x128xf32>
    %85 = vector.broadcast %0 : f32 to vector<8x128xf32>
    %86 = arith.addf %85, %84 : vector<8x128xf32>
    %c0_17 = arith.constant 0 : index
    %c0_18 = arith.constant 0 : index
    %c0_19 = arith.constant 0 : index
    %87 = vector.load %arg3[%c0_17, %c0_18, %c0_19] : memref<11x16x128xf32, #tpu.memory_space<vmem>>, vector<1x8x128xf32>
    %88 = vector.shape_cast %87 : vector<1x8x128xf32> to vector<8x128xf32>
    %89 = vector.shape_cast %86 : vector<8x128xf32> to vector<1x8x128xf32>
    tpu.vector_store %arg3[%c0_17, %c0_18, %c0_19], %89 {strides = array<i32>} : memref<11x16x128xf32, #tpu.memory_space<vmem>>, vector<1x8x128xf32>,
    %90 = arith.mulf %65, %83 : vector<8x128xf32>
    %91 = vector.broadcast %1 : f32 to vector<8x128xf32>
    %92 = arith.addf %91, %90 : vector<8x128xf32>
    %c1_20 = arith.constant 1 : index
    %c0_21 = arith.constant 0 : index
    %c0_22 = arith.constant 0 : index
    %93 = vector.load %arg3[%c1_20, %c0_21, %c0_22] : memref<11x16x128xf32, #tpu.memory_space<vmem>>, vector<1x8x128xf32>
    %94 = vector.shape_cast %93 : vector<1x8x128xf32> to vector<8x128xf32>
    %95 = vector.shape_cast %92 : vector<8x128xf32> to vector<1x8x128xf32>
    tpu.vector_store %arg3[%c1_20, %c0_21, %c0_22], %95 {strides = array<i32>} : memref<11x16x128xf32, #tpu.memory_space<vmem>>, vector<1x8x128xf32>,
    %96 = arith.mulf %70, %83 : vector<8x128xf32>
    %97 = vector.broadcast %2 : f32 to vector<8x128xf32>
    %98 = arith.addf %97, %96 : vector<8x128xf32>
    %c2_23 = arith.constant 2 : index
    %c0_24 = arith.constant 0 : index
    %c0_25 = arith.constant 0 : index
    %99 = vector.load %arg3[%c2_23, %c0_24, %c0_25] : memref<11x16x128xf32, #tpu.memory_space<vmem>>, vector<1x8x128xf32>
    %100 = vector.shape_cast %99 : vector<1x8x128xf32> to vector<8x128xf32>
    %101 = vector.shape_cast %98 : vector<8x128xf32> to vector<1x8x128xf32>
    tpu.vector_store %arg3[%c2_23, %c0_24, %c0_25], %101 {strides = array<i32>} : memref<11x16x128xf32, #tpu.memory_space<vmem>>, vector<1x8x128xf32>,
    %c11 = arith.constant 11 : index
    %c0_26 = arith.constant 0 : index
    %c0_27 = arith.constant 0 : index
    %102 = vector.load %arg2[%c11, %c0_26, %c0_27] : memref<12x16x128xf32, #tpu.memory_space<vmem>>, vector<1x8x128xf32>
    %103 = vector.shape_cast %102 : vector<1x8x128xf32> to vector<8x128xf32>
    %104 = arith.negf %103 : vector<8x128xf32>
    %105 = math.exp %104 : vector<8x128xf32>
    %cst_28 = arith.constant 1.000000e+00 : f32
    %106 = vector.broadcast %cst_28 : f32 to vector<8x128xf32>
    %107 = arith.addf %106, %105 : vector<8x128xf32>
    %108 = arith.divf %106, %107 : vector<8x128xf32>
    %c3_29 = arith.constant 3 : index
    %c0_30 = arith.constant 0 : index
    %c0_31 = arith.constant 0 : index
    %109 = vector.load %arg3[%c3_29, %c0_30, %c0_31] : memref<11x16x128xf32, #tpu.memory_space<vmem>>, vector<1x8x128xf32>
    %110 = vector.shape_cast %109 : vector<1x8x128xf32> to vector<8x128xf32>
    %111 = vector.shape_cast %108 : vector<8x128xf32> to vector<1x8x128xf32>
    tpu.vector_store %arg3[%c3_29, %c0_30, %c0_31], %111 {strides = array<i32>} : memref<11x16x128xf32, #tpu.memory_space<vmem>>, vector<1x8x128xf32>,
    %c3_32 = arith.constant 3 : index
    %c0_33 = arith.constant 0 : index
    %c0_34 = arith.constant 0 : index
    %112 = vector.load %arg2[%c3_32, %c0_33, %c0_34] : memref<12x16x128xf32, #tpu.memory_space<vmem>>, vector<1x8x128xf32>
    %113 = vector.shape_cast %112 : vector<1x8x128xf32> to vector<8x128xf32>
    %114 = math.exp %113 : vector<8x128xf32>
    %c4_35 = arith.constant 4 : index
    %c0_36 = arith.constant 0 : index
    %c0_37 = arith.constant 0 : index
    %115 = vector.load %arg3[%c4_35, %c0_36, %c0_37] : memref<11x16x128xf32, #tpu.memory_space<vmem>>, vector<1x8x128xf32>
    %116 = vector.shape_cast %115 : vector<1x8x128xf32> to vector<8x128xf32>
    %117 = vector.shape_cast %114 : vector<8x128xf32> to vector<1x8x128xf32>
    tpu.vector_store %arg3[%c4_35, %c0_36, %c0_37], %117 {strides = array<i32>} : memref<11x16x128xf32, #tpu.memory_space<vmem>>, vector<1x8x128xf32>,
    %c4_38 = arith.constant 4 : index
    %c0_39 = arith.constant 0 : index
    %c0_40 = arith.constant 0 : index
    %118 = vector.load %arg2[%c4_38, %c0_39, %c0_40] : memref<12x16x128xf32, #tpu.memory_space<vmem>>, vector<1x8x128xf32>
    %119 = vector.shape_cast %118 : vector<1x8x128xf32> to vector<8x128xf32>
    %120 = math.exp %119 : vector<8x128xf32>
    %c5_41 = arith.constant 5 : index
    %c0_42 = arith.constant 0 : index
    %c0_43 = arith.constant 0 : index
    %121 = vector.load %arg3[%c5_41, %c0_42, %c0_43] : memref<11x16x128xf32, #tpu.memory_space<vmem>>, vector<1x8x128xf32>
    %122 = vector.shape_cast %121 : vector<1x8x128xf32> to vector<8x128xf32>
    %123 = vector.shape_cast %120 : vector<8x128xf32> to vector<1x8x128xf32>
    tpu.vector_store %arg3[%c5_41, %c0_42, %c0_43], %123 {strides = array<i32>} : memref<11x16x128xf32, #tpu.memory_space<vmem>>, vector<1x8x128xf32>,
    %c5_44 = arith.constant 5 : index
    %c0_45 = arith.constant 0 : index
    %c0_46 = arith.constant 0 : index
    %124 = vector.load %arg2[%c5_44, %c0_45, %c0_46] : memref<12x16x128xf32, #tpu.memory_space<vmem>>, vector<1x8x128xf32>
    %125 = vector.shape_cast %124 : vector<1x8x128xf32> to vector<8x128xf32>
    %126 = math.exp %125 : vector<8x128xf32>
    %c6_47 = arith.constant 6 : index
    %c0_48 = arith.constant 0 : index
    %c0_49 = arith.constant 0 : index
    %127 = vector.load %arg3[%c6_47, %c0_48, %c0_49] : memref<11x16x128xf32, #tpu.memory_space<vmem>>, vector<1x8x128xf32>
    %128 = vector.shape_cast %127 : vector<1x8x128xf32> to vector<8x128xf32>
    %129 = vector.shape_cast %126 : vector<8x128xf32> to vector<1x8x128xf32>
    tpu.vector_store %arg3[%c6_47, %c0_48, %c0_49], %129 {strides = array<i32>} : memref<11x16x128xf32, #tpu.memory_space<vmem>>, vector<1x8x128xf32>,
    %c6_50 = arith.constant 6 : index
    %c0_51 = arith.constant 0 : index
    %c0_52 = arith.constant 0 : index
    %130 = vector.load %arg2[%c6_50, %c0_51, %c0_52] : memref<12x16x128xf32, #tpu.memory_space<vmem>>, vector<1x8x128xf32>
    %131 = vector.shape_cast %130 : vector<1x8x128xf32> to vector<8x128xf32>
    %c7 = arith.constant 7 : index
    %c0_53 = arith.constant 0 : index
    %c0_54 = arith.constant 0 : index
    %132 = vector.load %arg2[%c7, %c0_53, %c0_54] : memref<12x16x128xf32, #tpu.memory_space<vmem>>, vector<1x8x128xf32>
    %133 = vector.shape_cast %132 : vector<1x8x128xf32> to vector<8x128xf32>
    %c8 = arith.constant 8 : index
    %c0_55 = arith.constant 0 : index
    %c0_56 = arith.constant 0 : index
    %134 = vector.load %arg2[%c8, %c0_55, %c0_56] : memref<12x16x128xf32, #tpu.memory_space<vmem>>, vector<1x8x128xf32>
    %135 = vector.shape_cast %134 : vector<1x8x128xf32> to vector<8x128xf32>
    %c9 = arith.constant 9 : index
    %c0_57 = arith.constant 0 : index
    %c0_58 = arith.constant 0 : index
    %136 = vector.load %arg2[%c9, %c0_57, %c0_58] : memref<12x16x128xf32, #tpu.memory_space<vmem>>, vector<1x8x128xf32>
    %137 = vector.shape_cast %136 : vector<1x8x128xf32> to vector<8x128xf32>
    %138 = arith.mulf %131, %131 : vector<8x128xf32>
    %139 = arith.mulf %133, %133 : vector<8x128xf32>
    %140 = arith.addf %138, %139 : vector<8x128xf32>
    %141 = arith.mulf %135, %135 : vector<8x128xf32>
    %142 = arith.addf %140, %141 : vector<8x128xf32>
    %143 = arith.mulf %137, %137 : vector<8x128xf32>
    %144 = arith.addf %142, %143 : vector<8x128xf32>
    %cst_59 = arith.constant 9.99999996E-13 : f32
    %145 = vector.broadcast %cst_59 : f32 to vector<8x128xf32>
    %146 = arith.addf %144, %145 : vector<8x128xf32>
    %147 = math.rsqrt %146 : vector<8x128xf32>
    %148 = arith.mulf %131, %147 : vector<8x128xf32>
    %c7_60 = arith.constant 7 : index
    %c0_61 = arith.constant 0 : index
    %c0_62 = arith.constant 0 : index
    %149 = vector.load %arg3[%c7_60, %c0_61, %c0_62] : memref<11x16x128xf32, #tpu.memory_space<vmem>>, vector<1x8x128xf32>
    %150 = vector.shape_cast %149 : vector<1x8x128xf32> to vector<8x128xf32>
    %151 = vector.shape_cast %148 : vector<8x128xf32> to vector<1x8x128xf32>
    tpu.vector_store %arg3[%c7_60, %c0_61, %c0_62], %151 {strides = array<i32>} : memref<11x16x128xf32, #tpu.memory_space<vmem>>, vector<1x8x128xf32>,
    %152 = arith.mulf %133, %147 : vector<8x128xf32>
    %c8_63 = arith.constant 8 : index
    %c0_64 = arith.constant 0 : index
    %c0_65 = arith.constant 0 : index
    %153 = vector.load %arg3[%c8_63, %c0_64, %c0_65] : memref<11x16x128xf32, #tpu.memory_space<vmem>>, vector<1x8x128xf32>
    %154 = vector.shape_cast %153 : vector<1x8x128xf32> to vector<8x128xf32>
    %155 = vector.shape_cast %152 : vector<8x128xf32> to vector<1x8x128xf32>
    tpu.vector_store %arg3[%c8_63, %c0_64, %c0_65], %155 {strides = array<i32>} : memref<11x16x128xf32, #tpu.memory_space<vmem>>, vector<1x8x128xf32>,
    %156 = arith.mulf %135, %147 : vector<8x128xf32>
    %c9_66 = arith.constant 9 : index
    %c0_67 = arith.constant 0 : index
    %c0_68 = arith.constant 0 : index
    %157 = vector.load %arg3[%c9_66, %c0_67, %c0_68] : memref<11x16x128xf32, #tpu.memory_space<vmem>>, vector<1x8x128xf32>
    %158 = vector.shape_cast %157 : vector<1x8x128xf32> to vector<8x128xf32>
    %159 = vector.shape_cast %156 : vector<8x128xf32> to vector<1x8x128xf32>
    tpu.vector_store %arg3[%c9_66, %c0_67, %c0_68], %159 {strides = array<i32>} : memref<11x16x128xf32, #tpu.memory_space<vmem>>, vector<1x8x128xf32>,
    %160 = arith.mulf %137, %147 : vector<8x128xf32>
    %c10_69 = arith.constant 10 : index
    %c0_70 = arith.constant 0 : index
    %c0_71 = arith.constant 0 : index
    %161 = vector.load %arg3[%c10_69, %c0_70, %c0_71] : memref<11x16x128xf32, #tpu.memory_space<vmem>>, vector<1x8x128xf32>
    %162 = vector.shape_cast %161 : vector<1x8x128xf32> to vector<8x128xf32>
    %163 = vector.shape_cast %160 : vector<8x128xf32> to vector<1x8x128xf32>
    tpu.vector_store %arg3[%c10_69, %c0_70, %c0_71], %163 {strides = array<i32>} : memref<11x16x128xf32, #tpu.memory_space<vmem>>, vector<1x8x128xf32>,
    %c0_72 = arith.constant 0 : index
    %c8_73 = arith.constant 8 : index
    %c0_74 = arith.constant 0 : index
    %164 = vector.load %arg2[%c0_72, %c8_73, %c0_74] : memref<12x16x128xf32, #tpu.memory_space<vmem>>, vector<1x8x128xf32>
    %165 = vector.shape_cast %164 : vector<1x8x128xf32> to vector<8x128xf32>
    %c1_75 = arith.constant 1 : index
    %c8_76 = arith.constant 8 : index
    %c0_77 = arith.constant 0 : index
    %166 = vector.load %arg2[%c1_75, %c8_76, %c0_77] : memref<12x16x128xf32, #tpu.memory_space<vmem>>, vector<1x8x128xf32>
    %167 = vector.shape_cast %166 : vector<1x8x128xf32> to vector<8x128xf32>
    %c2_78 = arith.constant 2 : index
    %c8_79 = arith.constant 8 : index
    %c0_80 = arith.constant 0 : index
    %168 = vector.load %arg2[%c2_78, %c8_79, %c0_80] : memref<12x16x128xf32, #tpu.memory_space<vmem>>, vector<1x8x128xf32>
    %169 = vector.shape_cast %168 : vector<1x8x128xf32> to vector<8x128xf32>
    %c10_81 = arith.constant 10 : index
    %c8_82 = arith.constant 8 : index
    %c0_83 = arith.constant 0 : index
    %170 = vector.load %arg2[%c10_81, %c8_82, %c0_83] : memref<12x16x128xf32, #tpu.memory_space<vmem>>, vector<1x8x128xf32>
    %171 = vector.shape_cast %170 : vector<1x8x128xf32> to vector<8x128xf32>
    %172 = vector.broadcast %0 : f32 to vector<8x128xf32>
    %173 = arith.subf %165, %172 : vector<8x128xf32>
    %174 = vector.broadcast %1 : f32 to vector<8x128xf32>
    %175 = arith.subf %167, %174 : vector<8x128xf32>
    %176 = vector.broadcast %2 : f32 to vector<8x128xf32>
    %177 = arith.subf %169, %176 : vector<8x128xf32>
    %178 = arith.mulf %173, %173 : vector<8x128xf32>
    %179 = arith.mulf %175, %175 : vector<8x128xf32>
    %180 = arith.addf %178, %179 : vector<8x128xf32>
    %181 = arith.mulf %177, %177 : vector<8x128xf32>
    %182 = arith.addf %180, %181 : vector<8x128xf32>
    %cst_84 = arith.constant 9.99999996E-13 : f32
    %183 = vector.broadcast %cst_84 : f32 to vector<8x128xf32>
    %184 = arith.addf %182, %183 : vector<8x128xf32>
    %185 = math.rsqrt %184 : vector<8x128xf32>
    %186 = arith.mulf %173, %185 : vector<8x128xf32>
    %187 = arith.mulf %175, %185 : vector<8x128xf32>
    %188 = arith.mulf %177, %185 : vector<8x128xf32>
    %189 = vector.broadcast %3 : f32 to vector<8x128xf32>
    %190 = arith.mulf %186, %189 : vector<8x128xf32>
    %191 = vector.broadcast %4 : f32 to vector<8x128xf32>
    %192 = arith.mulf %187, %191 : vector<8x128xf32>
    %193 = arith.addf %190, %192 : vector<8x128xf32>
    %194 = vector.broadcast %5 : f32 to vector<8x128xf32>
    %195 = arith.mulf %188, %194 : vector<8x128xf32>
    %196 = arith.addf %193, %195 : vector<8x128xf32>
    %cst_85 = arith.constant 0.000000e+00 : f32
    %197 = vector.broadcast %cst_85 : f32 to vector<8x128xf32>
    %198 = arith.subf %197, %196 : vector<8x128xf32>
    %199 = arith.mulf %171, %171 : vector<8x128xf32>
    %200 = arith.mulf %198, %198 : vector<8x128xf32>
    %cst_86 = arith.constant 1.000000e+00 : f32
    %201 = vector.broadcast %cst_86 : f32 to vector<8x128xf32>
    %202 = arith.subf %201, %200 : vector<8x128xf32>
    %203 = arith.mulf %199, %202 : vector<8x128xf32>
    %cst_87 = arith.constant 1.000000e+00 : f32
    %204 = vector.broadcast %cst_87 : f32 to vector<8x128xf32>
    %205 = arith.cmpf ogt, %203, %204 : vector<8x128xf32>
    %cst_88 = arith.constant 1.000000e+00 : f32
    %206 = vector.broadcast %cst_88 : f32 to vector<8x128xf32>
    %207 = arith.subf %206, %203 : vector<8x128xf32>
    %cst_89 = arith.constant 0.000000e+00 : f32
    %208 = vector.broadcast %cst_89 : f32 to vector<8x128xf32>
    %209 = arith.maximumf %207, %208 : vector<8x128xf32>
    %210 = math.sqrt %209 : vector<8x128xf32>
    %211 = arith.mulf %171, %198 : vector<8x128xf32>
    %212 = arith.subf %211, %210 : vector<8x128xf32>
    %213 = arith.mulf %171, %186 : vector<8x128xf32>
    %214 = vector.broadcast %3 : f32 to vector<8x128xf32>
    %215 = arith.mulf %212, %214 : vector<8x128xf32>
    %216 = arith.addf %213, %215 : vector<8x128xf32>
    %217 = arith.select %205, %186, %216 : vector<8x128xi1>, vector<8x128xf32>
    %218 = arith.mulf %171, %187 : vector<8x128xf32>
    %219 = vector.broadcast %4 : f32 to vector<8x128xf32>
    %220 = arith.mulf %212, %219 : vector<8x128xf32>
    %221 = arith.addf %218, %220 : vector<8x128xf32>
    %222 = arith.select %205, %187, %221 : vector<8x128xi1>, vector<8x128xf32>
    %223 = arith.mulf %171, %188 : vector<8x128xf32>
    %224 = vector.broadcast %5 : f32 to vector<8x128xf32>
    %225 = arith.mulf %212, %224 : vector<8x128xf32>
    %226 = arith.addf %223, %225 : vector<8x128xf32>
    %227 = arith.select %205, %188, %226 : vector<8x128xi1>, vector<8x128xf32>
    %228 = vector.broadcast %3 : f32 to vector<8x128xf32>
    %229 = arith.mulf %217, %228 : vector<8x128xf32>
    %230 = vector.broadcast %4 : f32 to vector<8x128xf32>
    %231 = arith.mulf %222, %230 : vector<8x128xf32>
    %232 = arith.addf %229, %231 : vector<8x128xf32>
    %233 = vector.broadcast %5 : f32 to vector<8x128xf32>
    %234 = arith.mulf %227, %233 : vector<8x128xf32>
    %235 = arith.addf %232, %234 : vector<8x128xf32>
    %cst_90 = arith.constant 9.99999997E-7 : f32
    %236 = vector.broadcast %cst_90 : f32 to vector<8x128xf32>
    %237 = arith.maximumf %235, %236 : vector<8x128xf32>
    %238 = tpu.reciprocal %237 {approx = true} : vector<8x128xf32> -> vector<8x128xf32>
    %239 = vector.broadcast %6 : f32 to vector<8x128xf32>
    %240 = arith.mulf %239, %238 : vector<8x128xf32>
    %241 = arith.mulf %217, %240 : vector<8x128xf32>
    %242 = vector.broadcast %0 : f32 to vector<8x128xf32>
    %243 = arith.addf %242, %241 : vector<8x128xf32>
    %c0_91 = arith.constant 0 : index
    %c8_92 = arith.constant 8 : index
    %c0_93 = arith.constant 0 : index
    %244 = vector.load %arg3[%c0_91, %c8_92, %c0_93] : memref<11x16x128xf32, #tpu.memory_space<vmem>>, vector<1x8x128xf32>
    %245 = vector.shape_cast %244 : vector<1x8x128xf32> to vector<8x128xf32>
    %246 = vector.shape_cast %243 : vector<8x128xf32> to vector<1x8x128xf32>
    tpu.vector_store %arg3[%c0_91, %c8_92, %c0_93], %246 {strides = array<i32>} : memref<11x16x128xf32, #tpu.memory_space<vmem>>, vector<1x8x128xf32>,
    %247 = arith.mulf %222, %240 : vector<8x128xf32>
    %248 = vector.broadcast %1 : f32 to vector<8x128xf32>
    %249 = arith.addf %248, %247 : vector<8x128xf32>
    %c1_94 = arith.constant 1 : index
    %c8_95 = arith.constant 8 : index
    %c0_96 = arith.constant 0 : index
    %250 = vector.load %arg3[%c1_94, %c8_95, %c0_96] : memref<11x16x128xf32, #tpu.memory_space<vmem>>, vector<1x8x128xf32>
    %251 = vector.shape_cast %250 : vector<1x8x128xf32> to vector<8x128xf32>
    %252 = vector.shape_cast %249 : vector<8x128xf32> to vector<1x8x128xf32>
    tpu.vector_store %arg3[%c1_94, %c8_95, %c0_96], %252 {strides = array<i32>} : memref<11x16x128xf32, #tpu.memory_space<vmem>>, vector<1x8x128xf32>,
    %253 = arith.mulf %227, %240 : vector<8x128xf32>
    %254 = vector.broadcast %2 : f32 to vector<8x128xf32>
    %255 = arith.addf %254, %253 : vector<8x128xf32>
    %c2_97 = arith.constant 2 : index
    %c8_98 = arith.constant 8 : index
    %c0_99 = arith.constant 0 : index
    %256 = vector.load %arg3[%c2_97, %c8_98, %c0_99] : memref<11x16x128xf32, #tpu.memory_space<vmem>>, vector<1x8x128xf32>
    %257 = vector.shape_cast %256 : vector<1x8x128xf32> to vector<8x128xf32>
    %258 = vector.shape_cast %255 : vector<8x128xf32> to vector<1x8x128xf32>
    tpu.vector_store %arg3[%c2_97, %c8_98, %c0_99], %258 {strides = array<i32>} : memref<11x16x128xf32, #tpu.memory_space<vmem>>, vector<1x8x128xf32>,
    %c11_100 = arith.constant 11 : index
    %c8_101 = arith.constant 8 : index
    %c0_102 = arith.constant 0 : index
    %259 = vector.load %arg2[%c11_100, %c8_101, %c0_102] : memref<12x16x128xf32, #tpu.memory_space<vmem>>, vector<1x8x128xf32>
    %260 = vector.shape_cast %259 : vector<1x8x128xf32> to vector<8x128xf32>
    %261 = arith.negf %260 : vector<8x128xf32>
    %262 = math.exp %261 : vector<8x128xf32>
    %cst_103 = arith.constant 1.000000e+00 : f32
    %263 = vector.broadcast %cst_103 : f32 to vector<8x128xf32>
    %264 = arith.addf %263, %262 : vector<8x128xf32>
    %265 = arith.divf %263, %264 : vector<8x128xf32>
    %c3_104 = arith.constant 3 : index
    %c8_105 = arith.constant 8 : index
    %c0_106 = arith.constant 0 : index
    %266 = vector.load %arg3[%c3_104, %c8_105, %c0_106] : memref<11x16x128xf32, #tpu.memory_space<vmem>>, vector<1x8x128xf32>
    %267 = vector.shape_cast %266 : vector<1x8x128xf32> to vector<8x128xf32>
    %268 = vector.shape_cast %265 : vector<8x128xf32> to vector<1x8x128xf32>
    tpu.vector_store %arg3[%c3_104, %c8_105, %c0_106], %268 {strides = array<i32>} : memref<11x16x128xf32, #tpu.memory_space<vmem>>, vector<1x8x128xf32>,
    %c3_107 = arith.constant 3 : index
    %c8_108 = arith.constant 8 : index
    %c0_109 = arith.constant 0 : index
    %269 = vector.load %arg2[%c3_107, %c8_108, %c0_109] : memref<12x16x128xf32, #tpu.memory_space<vmem>>, vector<1x8x128xf32>
    %270 = vector.shape_cast %269 : vector<1x8x128xf32> to vector<8x128xf32>
    %271 = math.exp %270 : vector<8x128xf32>
    %c4_110 = arith.constant 4 : index
    %c8_111 = arith.constant 8 : index
    %c0_112 = arith.constant 0 : index
    %272 = vector.load %arg3[%c4_110, %c8_111, %c0_112] : memref<11x16x128xf32, #tpu.memory_space<vmem>>, vector<1x8x128xf32>
    %273 = vector.shape_cast %272 : vector<1x8x128xf32> to vector<8x128xf32>
    %274 = vector.shape_cast %271 : vector<8x128xf32> to vector<1x8x128xf32>
    tpu.vector_store %arg3[%c4_110, %c8_111, %c0_112], %274 {strides = array<i32>} : memref<11x16x128xf32, #tpu.memory_space<vmem>>, vector<1x8x128xf32>,
    %c4_113 = arith.constant 4 : index
    %c8_114 = arith.constant 8 : index
    %c0_115 = arith.constant 0 : index
    %275 = vector.load %arg2[%c4_113, %c8_114, %c0_115] : memref<12x16x128xf32, #tpu.memory_space<vmem>>, vector<1x8x128xf32>
    %276 = vector.shape_cast %275 : vector<1x8x128xf32> to vector<8x128xf32>
    %277 = math.exp %276 : vector<8x128xf32>
    %c5_116 = arith.constant 5 : index
    %c8_117 = arith.constant 8 : index
    %c0_118 = arith.constant 0 : index
    %278 = vector.load %arg3[%c5_116, %c8_117, %c0_118] : memref<11x16x128xf32, #tpu.memory_space<vmem>>, vector<1x8x128xf32>
    %279 = vector.shape_cast %278 : vector<1x8x128xf32> to vector<8x128xf32>
    %280 = vector.shape_cast %277 : vector<8x128xf32> to vector<1x8x128xf32>
    tpu.vector_store %arg3[%c5_116, %c8_117, %c0_118], %280 {strides = array<i32>} : memref<11x16x128xf32, #tpu.memory_space<vmem>>, vector<1x8x128xf32>,
    %c5_119 = arith.constant 5 : index
    %c8_120 = arith.constant 8 : index
    %c0_121 = arith.constant 0 : index
    %281 = vector.load %arg2[%c5_119, %c8_120, %c0_121] : memref<12x16x128xf32, #tpu.memory_space<vmem>>, vector<1x8x128xf32>
    %282 = vector.shape_cast %281 : vector<1x8x128xf32> to vector<8x128xf32>
    %283 = math.exp %282 : vector<8x128xf32>
    %c6_122 = arith.constant 6 : index
    %c8_123 = arith.constant 8 : index
    %c0_124 = arith.constant 0 : index
    %284 = vector.load %arg3[%c6_122, %c8_123, %c0_124] : memref<11x16x128xf32, #tpu.memory_space<vmem>>, vector<1x8x128xf32>
    %285 = vector.shape_cast %284 : vector<1x8x128xf32> to vector<8x128xf32>
    %286 = vector.shape_cast %283 : vector<8x128xf32> to vector<1x8x128xf32>
    tpu.vector_store %arg3[%c6_122, %c8_123, %c0_124], %286 {strides = array<i32>} : memref<11x16x128xf32, #tpu.memory_space<vmem>>, vector<1x8x128xf32>,
    %c6_125 = arith.constant 6 : index
    %c8_126 = arith.constant 8 : index
    %c0_127 = arith.constant 0 : index
    %287 = vector.load %arg2[%c6_125, %c8_126, %c0_127] : memref<12x16x128xf32, #tpu.memory_space<vmem>>, vector<1x8x128xf32>
    %288 = vector.shape_cast %287 : vector<1x8x128xf32> to vector<8x128xf32>
    %c7_128 = arith.constant 7 : index
    %c8_129 = arith.constant 8 : index
    %c0_130 = arith.constant 0 : index
    %289 = vector.load %arg2[%c7_128, %c8_129, %c0_130] : memref<12x16x128xf32, #tpu.memory_space<vmem>>, vector<1x8x128xf32>
    %290 = vector.shape_cast %289 : vector<1x8x128xf32> to vector<8x128xf32>
    %c8_131 = arith.constant 8 : index
    %c8_132 = arith.constant 8 : index
    %c0_133 = arith.constant 0 : index
    %291 = vector.load %arg2[%c8_131, %c8_132, %c0_133] : memref<12x16x128xf32, #tpu.memory_space<vmem>>, vector<1x8x128xf32>
    %292 = vector.shape_cast %291 : vector<1x8x128xf32> to vector<8x128xf32>
    %c9_134 = arith.constant 9 : index
    %c8_135 = arith.constant 8 : index
    %c0_136 = arith.constant 0 : index
    %293 = vector.load %arg2[%c9_134, %c8_135, %c0_136] : memref<12x16x128xf32, #tpu.memory_space<vmem>>, vector<1x8x128xf32>
    %294 = vector.shape_cast %293 : vector<1x8x128xf32> to vector<8x128xf32>
    %295 = arith.mulf %288, %288 : vector<8x128xf32>
    %296 = arith.mulf %290, %290 : vector<8x128xf32>
    %297 = arith.addf %295, %296 : vector<8x128xf32>
    %298 = arith.mulf %292, %292 : vector<8x128xf32>
    %299 = arith.addf %297, %298 : vector<8x128xf32>
    %300 = arith.mulf %294, %294 : vector<8x128xf32>
    %301 = arith.addf %299, %300 : vector<8x128xf32>
    %cst_137 = arith.constant 9.99999996E-13 : f32
    %302 = vector.broadcast %cst_137 : f32 to vector<8x128xf32>
    %303 = arith.addf %301, %302 : vector<8x128xf32>
    %304 = math.rsqrt %303 : vector<8x128xf32>
    %305 = arith.mulf %288, %304 : vector<8x128xf32>
    %c7_138 = arith.constant 7 : index
    %c8_139 = arith.constant 8 : index
    %c0_140 = arith.constant 0 : index
    %306 = vector.load %arg3[%c7_138, %c8_139, %c0_140] : memref<11x16x128xf32, #tpu.memory_space<vmem>>, vector<1x8x128xf32>
    %307 = vector.shape_cast %306 : vector<1x8x128xf32> to vector<8x128xf32>
    %308 = vector.shape_cast %305 : vector<8x128xf32> to vector<1x8x128xf32>
    tpu.vector_store %arg3[%c7_138, %c8_139, %c0_140], %308 {strides = array<i32>} : memref<11x16x128xf32, #tpu.memory_space<vmem>>, vector<1x8x128xf32>,
    %309 = arith.mulf %290, %304 : vector<8x128xf32>
    %c8_141 = arith.constant 8 : index
    %c8_142 = arith.constant 8 : index
    %c0_143 = arith.constant 0 : index
    %310 = vector.load %arg3[%c8_141, %c8_142, %c0_143] : memref<11x16x128xf32, #tpu.memory_space<vmem>>, vector<1x8x128xf32>
    %311 = vector.shape_cast %310 : vector<1x8x128xf32> to vector<8x128xf32>
    %312 = vector.shape_cast %309 : vector<8x128xf32> to vector<1x8x128xf32>
    tpu.vector_store %arg3[%c8_141, %c8_142, %c0_143], %312 {strides = array<i32>} : memref<11x16x128xf32, #tpu.memory_space<vmem>>, vector<1x8x128xf32>,
    %313 = arith.mulf %292, %304 : vector<8x128xf32>
    %c9_144 = arith.constant 9 : index
    %c8_145 = arith.constant 8 : index
    %c0_146 = arith.constant 0 : index
    %314 = vector.load %arg3[%c9_144, %c8_145, %c0_146] : memref<11x16x128xf32, #tpu.memory_space<vmem>>, vector<1x8x128xf32>
    %315 = vector.shape_cast %314 : vector<1x8x128xf32> to vector<8x128xf32>
    %316 = vector.shape_cast %313 : vector<8x128xf32> to vector<1x8x128xf32>
    tpu.vector_store %arg3[%c9_144, %c8_145, %c0_146], %316 {strides = array<i32>} : memref<11x16x128xf32, #tpu.memory_space<vmem>>, vector<1x8x128xf32>,
    %317 = arith.mulf %294, %304 : vector<8x128xf32>
    %c10_147 = arith.constant 10 : index
    %c8_148 = arith.constant 8 : index
    %c0_149 = arith.constant 0 : index
    %318 = vector.load %arg3[%c10_147, %c8_148, %c0_149] : memref<11x16x128xf32, #tpu.memory_space<vmem>>, vector<1x8x128xf32>
    %319 = vector.shape_cast %318 : vector<1x8x128xf32> to vector<8x128xf32>
    %320 = vector.shape_cast %317 : vector<8x128xf32> to vector<1x8x128xf32>
    tpu.vector_store %arg3[%c10_147, %c8_148, %c0_149], %320 {strides = array<i32>} : memref<11x16x128xf32, #tpu.memory_space<vmem>>, vector<1x8x128xf32>,
    return
  }
  func.func @transform_0(%arg0: i32) -> i32 {
    %c0_i32 = arith.constant 0 : i32
    %c0_i32_0 = arith.constant 0 : i32
    return %c0_i32 : i32
  }
  func.func @transform_1(%arg0: i32) -> (i32, i32, i32) {
    %c0_i32 = arith.constant 0 : i32
    %c0_i32_0 = arith.constant 0 : i32
    %c0_i32_1 = arith.constant 0 : i32
    return %c0_i32, %arg0, %c0_i32_0 : i32, i32, i32
  }
  func.func @transform_2(%arg0: i32) -> (i32, i32, i32) {
    %c0_i32 = arith.constant 0 : i32
    %c0_i32_0 = arith.constant 0 : i32
    %c0_i32_1 = arith.constant 0 : i32
    return %c0_i32, %arg0, %c0_i32_0 : i32, i32, i32
  }
}

</mosaic_0001>

<llo_original>
// kernel: gaussian_forward_pallas.1
$region0: #{gaussian_forward_pallas.1}
  #allocation0 [shape = 'u32[]', space=smem, size = 0x4, offset = 0x4, fixed_abs, tag = 'smem constant byte address 0x4 - core index']
  #allocation1 [shape = 'u32[72,128]{1,0:T(1,128)}', space=vmem, size = 0x9000, scoped, tag = 'internal scratch']
  %s0 = inlined_call_operand.vmem [shape: f32[8], index: 0, kind: input, shape index: {}]
  %s1 = inlined_call_operand.vmem [shape: f32[12,32,128], index: 1, kind: input, shape index: {}]
  %s2 = inlined_call_operand.vmem [shape: f32[11,32,128], index: 2, kind: output, shape index: {}]
  %s3 = sld [smem:[#allocation0]]
  $region117: #{gaussian_forward_pallas.1} parent=0
    _
  %s5 = ssub.s32 1, %s3
  %s6 = scalar_select 0, %s5, %s3
  $region1: #{gaussian_forward_pallas.1} parent=0
    #allocation2 [shape = 'u8[512]{0}', space=smem, size = 0x200, scoped, tag = 'input window, operand 0, single buffered']
    #allocation3 [shape = 's32[2]{0}', space=sflag, size = 0x8, scoped, tag = 'scoped memory for gaussian_forward_pallas.1']
    #allocation4 [shape = 'u8[196608]{0}', space=vmem, size = 0x30000, scoped, tag = 'input window, operand 1']
    #allocation5 [shape = 'u8[180224]{0}', space=vmem, size = 0x2c000, scoped, tag = 'output window, operand 0']
    %7 = vsyncpa [#allocation3], 0
    loop: start=0, step=1, limit=4
    $region2: #{gaussian_forward_pallas.1} parent=1 // loop_pre_header
      _
    $region3: #{gaussian_forward_pallas.1} parent=1 // loop_header
      %s9 = sphi 0, %s13
      %p10 = scmp.ge.s32.totalorder %s9, 4
      %s17 = sphi 0, %s17
      %s19 = sphi 0, %s17
      %s20 = sphi 0, %s19
      %s34 = sphi 0, %s20
      %s40 = sphi 0, %s42
      %s43 = sphi 0, %s40
      %s44 = sphi 0, %s43
      %s60 = sphi 0, %s44
      %s66 = sphi 0, %s68
      %s69 = sphi 0, %s66
      %s70 = sphi 0, %s69
      %s86 = sphi 0, %s70
    $region4: #{gaussian_forward_pallas.1} parent=1 // loop_header_branch
      %12 = sbr.rel (%p10) target = $region8
    $region5: #{gaussian_forward_pallas.1} parent=1 // loop_body
      %s14 = ssub.s32 %s9, 1
      %s15 = ssub.s32 %s9, 2
      %s16 = sadd.s32 %s9, 1
      %s18 = sadd.s32 %s17, 1
      %p21 = scmp.eq.s32.totalorder %s9, 1
      %p22 = scmp.ne.s32.totalorder %s17, %s19
      %p23 = scmp.eq.s32.totalorder %s9, 0
      %p24 = por %p22, %p23
      %p25 = scmp.ne.s32.totalorder %s17, %s19
      %p26 = scmp.eq.s32.totalorder %s14, 1
      %p27 = por %p25, %p26
      %p28 = scmp.ne.s32.totalorder %s19, %s20
      %p29 = scmp.eq.s32.totalorder %s14, 0
      %p30 = por %p28, %p29
      %p31 = scmp.ne.s32.totalorder %s19, %s20
      %p32 = scmp.eq.s32.totalorder %s15, 1
      %p33 = por %p31, %p32
      %p35 = scmp.ne.s32.totalorder %s20, %s34
      %p36 = scmp.eq.s32.totalorder %s15, 0
      %p37 = por %p35, %p36
      %s38 = ssub.s32 %s9, %s16
      %p39 = scmp.eq.s32.totalorder %s38, 0
      %s41 = sadd.s32 %s40, 1
      %s42 = scalar_select %p39, %s40, %s41
      %p45 = pneg %p39
      %p46 = scmp.eq.s32.totalorder %s9, 1
      %p47 = por %p45, %p46
      %p48 = scmp.ne.s32.totalorder %s40, %s43
      %p49 = scmp.eq.s32.totalorder %s9, 0
      %p50 = por %p48, %p49
      %p51 = scmp.ne.s32.totalorder %s40, %s43
      %p52 = scmp.eq.s32.totalorder %s14, 1
      %p53 = por %p51, %p52
      %p54 = scmp.ne.s32.totalorder %s43, %s44
      %p55 = scmp.eq.s32.totalorder %s14, 0
      %p56 = por %p54, %p55
      %p57 = scmp.ne.s32.totalorder %s43, %s44
      %p58 = scmp.eq.s32.totalorder %s15, 1
      %p59 = por %p57, %p58
      %p61 = scmp.ne.s32.totalorder %s44, %s60
      %p62 = scmp.eq.s32.totalorder %s15, 0
      %p63 = por %p61, %p62
      %s64 = ssub.s32 %s9, %s16
      %p65 = scmp.eq.s32.totalorder %s64, 0
      %s67 = sadd.s32 %s66, 1
      %s68 = scalar_select %p65, %s66, %s67
      %p71 = pneg %p65
      %p72 = scmp.eq.s32.totalorder %s9, 1
      %p73 = por %p71, %p72
      %p74 = scmp.ne.s32.totalorder %s66, %s69
      %p75 = scmp.eq.s32.totalorder %s9, 0
      %p76 = por %p74, %p75
      %p77 = scmp.ne.s32.totalorder %s66, %s69
      %p78 = scmp.eq.s32.totalorder %s14, 1
      %p79 = por %p77, %p78
      %p80 = scmp.ne.s32.totalorder %s69, %s70
      %p81 = scmp.eq.s32.totalorder %s14, 0
      %p82 = por %p80, %p81
      %p83 = scmp.ne.s32.totalorder %s69, %s70
      %p84 = scmp.eq.s32.totalorder %s15, 1
      %p85 = por %p83, %p84
      %p87 = scmp.ne.s32.totalorder %s70, %s86
      %p88 = scmp.eq.s32.totalorder %s15, 0
      %p89 = por %p87, %p88
      %p90 = scmp.le.s32.totalorder 1, %s9
      %p91 = scmp.lt.s32.totalorder %s9, 3
      %p92 = pnand %p90, %p91
      %p93 = pneg %p92
      // Predicated region
      $region9: #{gaussian_forward_pallas.1} parent=5 // pred_check
        _
      $region10: #{gaussian_forward_pallas.1} parent=5 // pred_check_branch
        %95 = sbr.rel (%p92) target = $region12
      $region11: #{gaussian_forward_pallas.1} parent=5 // pred_region
        %s96 = ssub.s32 %s9, 1
        // Predicated region
        $region13: #{gaussian_forward_pallas.1} parent=11 // pred_check
          %p97 = pneg %p30
        $region14: #{gaussian_forward_pallas.1} parent=11 // pred_check_branch
          %99 = sbr.rel (%p97) target = $region16
        $region15: #{gaussian_forward_pallas.1} parent=11 // pred_region
          %101 = vsyncadd [#allocation3], 0
          %s103 = sshll.u32 %s0, 4
          %s104 = int_to_ptr.vmem [resolvable:$true] %s103
          %106 = dma.vmem_to_smem %s104, 16, [#allocation2], [#allocation3]
        $region16: #{gaussian_forward_pallas.1} parent=11 // pred_fallthru
          _
      $region12: #{gaussian_forward_pallas.1} parent=5 // pred_fallthru
        _
      %p107 = scmp.lt.s32.totalorder %s9, 2
      // Predicated region
      $region17: #{gaussian_forward_pallas.1} parent=5 // pred_check
        %p108 = pneg %p107
      $region18: #{gaussian_forward_pallas.1} parent=5 // pred_check_branch
        %110 = sbr.rel (%p108) target = $region20
      $region19: #{gaussian_forward_pallas.1} parent=5 // pred_region
        // Predicated region
        $region21: #{gaussian_forward_pallas.1} parent=19 // pred_check
          %p111 = pneg %p50
        $region22: #{gaussian_forward_pallas.1} parent=19 // pred_check_branch
          %113 = sbr.rel (%p111) target = $region24
        $region23: #{gaussian_forward_pallas.1} parent=19 // pred_region
          %s114 = sand.u32 %s40, 1
          %s115 = sand.u32 %s40, 1
          %s116 = smul.addr %s115, 192
          %s117 = scalar_lea.vmem [#allocation4], %s116
          %s118 = smul.u32 2, %s9
          %s119 = smul.addr %s118, 8
          %s120 = scalar_lea.vmem %s1, %s119
          // Predicated region
          $region25: #{gaussian_forward_pallas.1} parent=23 // pred_check
            _
          $region26: #{gaussian_forward_pallas.1} parent=23 // pred_check_branch
            %122 = sbr.rel (0) target = $region28
          $region27: #{gaussian_forward_pallas.1} parent=23 // pred_region
            // Predicated region
            $region29: #{gaussian_forward_pallas.1} parent=27 // pred_check
              _
            $region30: #{gaussian_forward_pallas.1} parent=27 // pred_check_branch
              %124 = sbr.rel (0) target = $region32
            $region31: #{gaussian_forward_pallas.1} parent=27 // pred_region
              // Predicated region
              $region44: #{gaussian_forward_pallas.1} parent=31 // pred_check
                _
              $region45: #{gaussian_forward_pallas.1} parent=31 // pred_check_branch
                %186 = sbr.rel (0) target = $region47
              $region46: #{gaussian_forward_pallas.1} parent=31 // pred_region
                loop: start=0, step=1, limit=1
                $region48: #{gaussian_forward_pallas.1} parent=46 // loop_pre_header
                  _
                $region49: #{gaussian_forward_pallas.1} parent=46 // loop_header
                  %s188 = sphi 0, %s192
                  %p189 = scmp.ge.s32.totalorder %s188, 1
                  %s193 = sphi %s120, %s120
                  %s194 = sphi %s117, %s117
                $region50: #{gaussian_forward_pallas.1} parent=46 // loop_header_branch
                  %191 = sbr.rel (%p189) target = $region54
                $region51: #{gaussian_forward_pallas.1} parent=46 // loop_body
                  %v195 = vld [vmem:[%s193] sm:$0xff]
                  %196 = vst [vmem:[%s194] sm:$0xff] %v195
                  %v197 = vld [vmem:[%s193 + $0x8] sm:$0xff]
                  %198 = vst [vmem:[%s194 + $0x8] sm:$0xff] %v197
                  %v199 = vld [vmem:[%s193 + $0x20] sm:$0xff]
                  %200 = vst [vmem:[%s194 + $0x10] sm:$0xff] %v199
                  %v201 = vld [vmem:[%s193 + $0x28] sm:$0xff]
                  %202 = vst [vmem:[%s194 + $0x18] sm:$0xff] %v201
                  %v203 = vld [vmem:[%s193 + $0x40] sm:$0xff]
                  %204 = vst [vmem:[%s194 + $0x20] sm:$0xff] %v203
                  %v205 = vld [vmem:[%s193 + $0x48] sm:$0xff]
                  %206 = vst [vmem:[%s194 + $0x28] sm:$0xff] %v205
                  %v207 = vld [vmem:[%s193 + $0x60] sm:$0xff]
                  %208 = vst [vmem:[%s194 + $0x30] sm:$0xff] %v207
                  %v209 = vld [vmem:[%s193 + $0x68] sm:$0xff]
                  %210 = vst [vmem:[%s194 + $0x38] sm:$0xff] %v209
                  %v211 = vld [vmem:[%s193 + $0x80] sm:$0xff]
                  %212 = vst [vmem:[%s194 + $0x40] sm:$0xff] %v211
                  %v213 = vld [vmem:[%s193 + $0x88] sm:$0xff]
                  %214 = vst [vmem:[%s194 + $0x48] sm:$0xff] %v213
                  %v215 = vld [vmem:[%s193 + $0xa0] sm:$0xff]
                  %216 = vst [vmem:[%s194 + $0x50] sm:$0xff] %v215
                  %v217 = vld [vmem:[%s193 + $0xa8] sm:$0xff]
                  %218 = vst [vmem:[%s194 + $0x58] sm:$0xff] %v217
                  %v219 = vld [vmem:[%s193 + $0xc0] sm:$0xff]
                  %220 = vst [vmem:[%s194 + $0x60] sm:$0xff] %v219
                  %v221 = vld [vmem:[%s193 + $0xc8] sm:$0xff]
                  %222 = vst [vmem:[%s194 + $0x68] sm:$0xff] %v221
                  %v223 = vld [vmem:[%s193 + $0xe0] sm:$0xff]
                  %224 = vst [vmem:[%s194 + $0x70] sm:$0xff] %v223
                  %v225 = vld [vmem:[%s193 + $0xe8] sm:$0xff]
                  %226 = vst [vmem:[%s194 + $0x78] sm:$0xff] %v225
                  %v227 = vld [vmem:[%s193 + $0x100] sm:$0xff]
                  %228 = vst [vmem:[%s194 + $0x80] sm:$0xff] %v227
                  %v229 = vld [vmem:[%s193 + $0x108] sm:$0xff]
                  %230 = vst [vmem:[%s194 + $0x88] sm:$0xff] %v229
                  %v231 = vld [vmem:[%s193 + $0x120] sm:$0xff]
                  %232 = vst [vmem:[%s194 + $0x90] sm:$0xff] %v231
                  %v233 = vld [vmem:[%s193 + $0x128] sm:$0xff]
                  %234 = vst [vmem:[%s194 + $0x98] sm:$0xff] %v233
                  %v235 = vld [vmem:[%s193 + $0x140] sm:$0xff]
                  %236 = vst [vmem:[%s194 + $0xa0] sm:$0xff] %v235
                  %v237 = vld [vmem:[%s193 + $0x148] sm:$0xff]
                  %238 = vst [vmem:[%s194 + $0xa8] sm:$0xff] %v237
                  %v239 = vld [vmem:[%s193 + $0x160] sm:$0xff]
                  %240 = vst [vmem:[%s194 + $0xb0] sm:$0xff] %v239
                  %v241 = vld [vmem:[%s193 + $0x168] sm:$0xff]
                  %242 = vst [vmem:[%s194 + $0xb8] sm:$0xff] %v241
                $region52: #{gaussian_forward_pallas.1} parent=46 // loop_footer
                  %s192 = sadd.s32 1, %s188
                $region53: #{gaussian_forward_pallas.1} parent=46 // loop_footer_branch
                  %187 = sbr.rel target = $region49
                $region54: #{gaussian_forward_pallas.1} parent=46 // loop_exit
                  _
              $region47: #{gaussian_forward_pallas.1} parent=31 // pred_fallthru
                _
              // Predicated region
              $region55: #{gaussian_forward_pallas.1} parent=31 // pred_check
                _
              $region56: #{gaussian_forward_pallas.1} parent=31 // pred_check_branch
                %244 = sbr.rel target = $region58
              $region57: #{gaussian_forward_pallas.1} parent=31 // pred_region
                _
              $region58: #{gaussian_forward_pallas.1} parent=31 // pred_fallthru
                _
            $region32: #{gaussian_forward_pallas.1} parent=27 // pred_fallthru
              _
            // Predicated region
            $region33: #{gaussian_forward_pallas.1} parent=27 // pred_check
              _
            $region34: #{gaussian_forward_pallas.1} parent=27 // pred_check_branch
              %126 = sbr.rel target = $region36
            $region35: #{gaussian_forward_pallas.1} parent=27 // pred_region
              %s128 = ssub.s32 256, 1
              loop: start=0, step=1, limit=1
              $region37: #{gaussian_forward_pallas.1} parent=35 // loop_pre_header
                _
              $region38: #{gaussian_forward_pallas.1} parent=35 // loop_header
                %s130 = sphi 0, %s134
                %p131 = scmp.ge.s32.totalorder %s130, 1
                %s135 = sphi %s120, %s120
                %s136 = sphi %s117, %s117
              $region39: #{gaussian_forward_pallas.1} parent=35 // loop_header_branch
                %133 = sbr.rel (%p131) target = $region43
              $region40: #{gaussian_forward_pallas.1} parent=35 // loop_body
                %v137 = vld [vmem:[%s135] sm:%s128]
                %138 = vst [vmem:[%s136] sm:%s128] %v137
                %v139 = vld [vmem:[%s135 + $0x8] sm:%s128]
                %140 = vst [vmem:[%s136 + $0x8] sm:%s128] %v139
                %v141 = vld [vmem:[%s135 + $0x20] sm:%s128]
                %142 = vst [vmem:[%s136 + $0x10] sm:%s128] %v141
                %v143 = vld [vmem:[%s135 + $0x28] sm:%s128]
                %144 = vst [vmem:[%s136 + $0x18] sm:%s128] %v143
                %v145 = vld [vmem:[%s135 + $0x40] sm:%s128]
                %146 = vst [vmem:[%s136 + $0x20] sm:%s128] %v145
                %v147 = vld [vmem:[%s135 + $0x48] sm:%s128]
                %148 = vst [vmem:[%s136 + $0x28] sm:%s128] %v147
                %v149 = vld [vmem:[%s135 + $0x60] sm:%s128]
                %150 = vst [vmem:[%s136 + $0x30] sm:%s128] %v149
                %v151 = vld [vmem:[%s135 + $0x68] sm:%s128]
                %152 = vst [vmem:[%s136 + $0x38] sm:%s128] %v151
                %v153 = vld [vmem:[%s135 + $0x80] sm:%s128]
                %154 = vst [vmem:[%s136 + $0x40] sm:%s128] %v153
                %v155 = vld [vmem:[%s135 + $0x88] sm:%s128]
                %156 = vst [vmem:[%s136 + $0x48] sm:%s128] %v155
                %v157 = vld [vmem:[%s135 + $0xa0] sm:%s128]
                %158 = vst [vmem:[%s136 + $0x50] sm:%s128] %v157
                %v159 = vld [vmem:[%s135 + $0xa8] sm:%s128]
                %160 = vst [vmem:[%s136 + $0x58] sm:%s128] %v159
                %v161 = vld [vmem:[%s135 + $0xc0] sm:%s128]
                %162 = vst [vmem:[%s136 + $0x60] sm:%s128] %v161
                %v163 = vld [vmem:[%s135 + $0xc8] sm:%s128]
                %164 = vst [vmem:[%s136 + $0x68] sm:%s128] %v163
                %v165 = vld [vmem:[%s135 + $0xe0] sm:%s128]
                %166 = vst [vmem:[%s136 + $0x70] sm:%s128] %v165
                %v167 = vld [vmem:[%s135 + $0xe8] sm:%s128]
                %168 = vst [vmem:[%s136 + $0x78] sm:%s128] %v167
                %v169 = vld [vmem:[%s135 + $0x100] sm:%s128]
                %170 = vst [vmem:[%s136 + $0x80] sm:%s128] %v169
                %v171 = vld [vmem:[%s135 + $0x108] sm:%s128]
                %172 = vst [vmem:[%s136 + $0x88] sm:%s128] %v171
                %v173 = vld [vmem:[%s135 + $0x120] sm:%s128]
                %174 = vst [vmem:[%s136 + $0x90] sm:%s128] %v173
                %v175 = vld [vmem:[%s135 + $0x128] sm:%s128]
                %176 = vst [vmem:[%s136 + $0x98] sm:%s128] %v175
                %v177 = vld [vmem:[%s135 + $0x140] sm:%s128]
                %178 = vst [vmem:[%s136 + $0xa0] sm:%s128] %v177
                %v179 = vld [vmem:[%s135 + $0x148] sm:%s128]
                %180 = vst [vmem:[%s136 + $0xa8] sm:%s128] %v179
                %v181 = vld [vmem:[%s135 + $0x160] sm:%s128]
                %182 = vst [vmem:[%s136 + $0xb0] sm:%s128] %v181
                %v183 = vld [vmem:[%s135 + $0x168] sm:%s128]
                %184 = vst [vmem:[%s136 + $0xb8] sm:%s128] %v183
              $region41: #{gaussian_forward_pallas.1} parent=35 // loop_footer
                %s134 = sadd.s32 1, %s130
              $region42: #{gaussian_forward_pallas.1} parent=35 // loop_footer_branch
                %129 = sbr.rel target = $region38
              $region43: #{gaussian_forward_pallas.1} parent=35 // loop_exit
                _
            $region36: #{gaussian_forward_pallas.1} parent=27 // pred_fallthru
              _
          $region28: #{gaussian_forward_pallas.1} parent=23 // pred_fallthru
            _
          %245 = vnop
        $region24: #{gaussian_forward_pallas.1} parent=19 // pred_fallthru
          _
      $region20: #{gaussian_forward_pallas.1} parent=5 // pred_fallthru
        _
      %p246 = scmp.le.s32.totalorder 1, %s9
      %p247 = scmp.lt.s32.totalorder %s9, 3
      %p248 = pnand %p246, %p247
      %p249 = pneg %p248
      // Predicated region
      $region59: #{gaussian_forward_pallas.1} parent=5 // pred_check
        _
      $region60: #{gaussian_forward_pallas.1} parent=5 // pred_check_branch
        %251 = sbr.rel (%p248) target = $region62
      $region61: #{gaussian_forward_pallas.1} parent=5 // pred_region
        %s252 = ssub.s32 %s9, 1
        // Predicated region
        $region63: #{gaussian_forward_pallas.1} parent=61 // pred_check
          %p253 = pneg %p30
        $region64: #{gaussian_forward_pallas.1} parent=61 // pred_check_branch
          %255 = sbr.rel (%p253) target = $region66
        $region65: #{gaussian_forward_pallas.1} parent=61 // pred_region
          %257 = dma.done [#allocation3], 16
        $region66: #{gaussian_forward_pallas.1} parent=61 // pred_fallthru
          _
        %s258 = sand.u32 %s43, 1
        %s259 = sand.u32 %s43, 1
        %s260 = smul.addr %s259, 192
        %s261 = scalar_lea.vmem [#allocation4], %s260
        // Predicated region
        $region67: #{gaussian_forward_pallas.1} parent=61 // pred_check
          %p262 = pneg %p56
        $region68: #{gaussian_forward_pallas.1} parent=61 // pred_check_branch
          %264 = sbr.rel (%p262) target = $region70
        $region69: #{gaussian_forward_pallas.1} parent=61 // pred_region
          _
        $region70: #{gaussian_forward_pallas.1} parent=61 // pred_fallthru
          _
        %265 = sfence
        %p266 = pneg %p30
        %p267 = pneg %p27
        %s268 = sand.u32 %s43, 1
        %s269 = sand.u32 %s43, 1
        %s270 = smul.addr %s269, 192
        %s271 = scalar_lea.vmem [#allocation4], %s270
        %p272 = pneg %p56
        %p273 = pneg %p53
        %p274 = pneg %p82
        %p275 = pneg %p79
        %s276 = sand.u32 %s69, 1
        %s277 = sand.u32 %s69, 1
        %s278 = smul.addr %s277, 176
        %s279 = scalar_lea.vmem [#allocation5], %s278
        %s280 = smul.u32 2, %s14
        %s281 = smul.u32 2, %s14
        %s282 = sld [smem:[#allocation2]]
        %s283 = sld [smem:[#allocation2 + $0x1]]
        %s284 = sld [smem:[#allocation2 + $0x2]]
        %s285 = sld [smem:[#allocation2 + $0x3]]
        %s286 = sld [smem:[#allocation2 + $0x4]]
        %s287 = sld [smem:[#allocation2 + $0x5]]
        %s288 = sld [smem:[#allocation2 + $0x6]]
        %v289 = vld [vmem:[%s261] sm:$0xff]
        %s290 = scalar_lea.vmem %s261, 16 [#allocation4]
        %v291 = vld [vmem:[%s290] sm:$0xff]
        %s292 = scalar_lea.vmem %s261, 32 [#allocation4]
        %v293 = vld [vmem:[%s292] sm:$0xff]
        %s294 = scalar_lea.vmem %s261, 160 [#allocation4]
        %v295 = vld [vmem:[%s294] sm:$0xff]
        %v296 = vstv %s282
        %v297 = vsub.f32 %v289, %v296
        %v298 = vstv %s283
        %v299 = vsub.f32 %v291, %v298
        %v300 = vstv %s284
        %v301 = vsub.f32 %v293, %v300
        %v302 = vmul.f32 %v297, %v297
        %v303 = vmul.f32 %v299, %v299
        %v304 = vadd.f32 %v302, %v303
        %v305 = vmul.f32 %v301, %v301
        %v306 = vadd.f32 %v304, %v305
        %v307 = vadd.f32 %v306, 1e-12
        %v308 = vrsqrt.pop %v307
        %v309 = vmul.f32 %v308, %v307
        %v310 = vmul.f32 %v309, %v308
        %v311 = vmul.f32 0.5, %v310
        %v312 = vsub.f32 1.5, %v311
        %v313 = vmul.f32 %v308, %v312
        %vm314 = vweird.f32 %v307
        %vm315 = vweird.f32 %v308
        %vm316 = vmor %vm314, %vm315
        %v317 = vsel %vm316, %v308, %v313
        %v318 = vmul.f32 %v297, %v317
        %v319 = vmul.f32 %v299, %v317
        %v320 = vmul.f32 %v301, %v317
        %v321 = vstv %s285
        %v322 = vmul.f32 %v318, %v321
        %v323 = vstv %s286
        %v324 = vmul.f32 %v319, %v323
        %v325 = vadd.f32 %v322, %v324
        %v326 = vstv %s287
        %v327 = vmul.f32 %v320, %v326
        %v328 = vadd.f32 %v325, %v327
        %v329 = vsub.f32 0.0, %v328
        %v330 = vmul.f32 %v295, %v295
        %v331 = vmul.f32 %v329, %v329
        %v332 = vsub.f32 1.0, %v331
        %v333 = vmul.f32 %v330, %v332
        %vm334 = vcmp.gt.f32.partialorder %v333, 1.0
        %v335 = vsub.f32 1.0, %v333
        %v336 = vmax.f32 %v335, 0.0
        %v337 = vrsqrt.pop %v336
        %v338 = vmul.f32 %v337, %v336
        %v339 = vmul.f32 %v338, %v337
        %v340 = vmul.f32 0.5, %v339
        %v341 = vsub.f32 1.5, %v340
        %v342 = vmul.f32 %v337, %v341
        %v343 = vmul.f32 %v336, %v342
        %vm344 = vcmp.eq.f32.partialorder %v336, inf
        %v345 = vsel %vm344, %v336, %v343
        %vm346 = vcmp.eq.f32.partialorder %v336, 0.0
        %v347 = vand.u32 %v336, 2147483648
        %v348 = vsel %vm346, %v347, %v345
        %v349 = vmul.f32 %v295, %v329
        %v350 = vsub.f32 %v349, %v348
        %v351 = vmul.f32 %v295, %v318
        %v352 = vmul.f32 %v350, %v321
        %v353 = vadd.f32 %v351, %v352
        %v354 = vsel %vm334, %v318, %v353
        %v355 = vmul.f32 %v295, %v319
        %v356 = vmul.f32 %v350, %v323
        %v357 = vadd.f32 %v355, %v356
        %v358 = vsel %vm334, %v319, %v357
        %v359 = vmul.f32 %v295, %v320
        %v360 = vmul.f32 %v350, %v326
        %v361 = vadd.f32 %v359, %v360
        %v362 = vsel %vm334, %v320, %v361
        %v363 = vmul.f32 %v354, %v321
        %v364 = vmul.f32 %v358, %v323
        %v365 = vadd.f32 %v363, %v364
        %v366 = vmul.f32 %v362, %v326
        %v367 = vadd.f32 %v365, %v366
        %v368 = vmax.f32 %v367, 1e-06
        %v369 = vrcp.pop %v368
        %v370 = vstv %s288
        %v371 = vmul.f32 %v370, %v369
        %v372 = vmul.f32 %v354, %v371
        %v373 = vadd.f32 %v296, %v372
        %374 = vst [vmem:[%s279] sm:$0xff] %v373
        %v375 = vmul.f32 %v358, %v371
        %v376 = vadd.f32 %v298, %v375
        %s377 = scalar_lea.vmem %s279, 16 [#allocation5]
        %378 = vst [vmem:[%s377] sm:$0xff] %v376
        %v379 = vmul.f32 %v362, %v371
        %v380 = vadd.f32 %v300, %v379
        %s381 = scalar_lea.vmem %s279, 32 [#allocation5]
        %382 = vst [vmem:[%s381] sm:$0xff] %v380
        %s383 = scalar_lea.vmem %s261, 176 [#allocation4]
        %v384 = vld [vmem:[%s383] sm:$0xff]
        %v385 = vxor.u32 %v384, 2147483648
        %v386 = vmul.f32 %v385, 1.442695
        %v387 = vpow.pop %v386
        %v388 = vadd.f32 %v387, 1.0
        %v389 = vrcp.pop %v388
        %v390 = vmul.f32 %v388, %v389
        %v391 = vsub.f32 1.0, %v390
        %v392 = vmul.f32 %v389, %v391
        %v393 = vadd.f32 %v389, %v392
        %vm394 = vweird.f32 %v388
        %vm395 = vweird.f32 %v389
        %vm396 = vmor %vm394, %vm395
        %v397 = vsel %vm396, %v389, %v393
        %v398 = vand.u32 2147483647, %v388
        %vm399 = vcmp.eq.f32.partialorder %v398, 8.507059e+37
        %v400 = vand.u32 %v388, 2147483648
        %v401 = vor.u32 1.1754944e-38, %v400
        %v402 = vsel %vm399, %v401, %v397
        %v403 = vmul.f32 1.0, %v402
        %s404 = scalar_lea.vmem %s279, 48 [#allocation5]
        %405 = vst [vmem:[%s404] sm:$0xff] %v403
        %s406 = scalar_lea.vmem %s261, 48 [#allocation4]
        %v407 = vld [vmem:[%s406] sm:$0xff]
        %v408 = vmul.f32 %v407, 1.442695
        %v409 = vpow.pop %v408
        %s410 = scalar_lea.vmem %s279, 64 [#allocation5]
        %411 = vst [vmem:[%s410] sm:$0xff] %v409
        %s412 = scalar_lea.vmem %s261, 64 [#allocation4]
        %v413 = vld [vmem:[%s412] sm:$0xff]
        %v414 = vmul.f32 %v413, 1.442695
        %v415 = vpow.pop %v414
        %s416 = scalar_lea.vmem %s279, 80 [#allocation5]
        %417 = vst [vmem:[%s416] sm:$0xff] %v415
        %s418 = scalar_lea.vmem %s261, 80 [#allocation4]
        %v419 = vld [vmem:[%s418] sm:$0xff]
        %v420 = vmul.f32 %v419, 1.442695
        %v421 = vpow.pop %v420
        %s422 = scalar_lea.vmem %s279, 96 [#allocation5]
        %423 = vst [vmem:[%s422] sm:$0xff] %v421
        %s424 = scalar_lea.vmem %s261, 96 [#allocation4]
        %v425 = vld [vmem:[%s424] sm:$0xff]
        %s426 = scalar_lea.vmem %s261, 112 [#allocation4]
        %v427 = vld [vmem:[%s426] sm:$0xff]
        %s428 = scalar_lea.vmem %s261, 128 [#allocation4]
        %v429 = vld [vmem:[%s428] sm:$0xff]
        %s430 = scalar_lea.vmem %s261, 144 [#allocation4]
        %v431 = vld [vmem:[%s430] sm:$0xff]
        %v432 = vmul.f32 %v425, %v425
        %v433 = vmul.f32 %v427, %v427
        %v434 = vadd.f32 %v432, %v433
        %v435 = vmul.f32 %v429, %v429
        %v436 = vadd.f32 %v434, %v435
        %v437 = vmul.f32 %v431, %v431
        %v438 = vadd.f32 %v436, %v437
        %v439 = vadd.f32 %v438, 1e-12
        %v440 = vrsqrt.pop %v439
        %v441 = vmul.f32 %v440, %v439
        %v442 = vmul.f32 %v441, %v440
        %v443 = vmul.f32 0.5, %v442
        %v444 = vsub.f32 1.5, %v443
        %v445 = vmul.f32 %v440, %v444
        %vm446 = vweird.f32 %v439
        %vm447 = vweird.f32 %v440
        %vm448 = vmor %vm446, %vm447
        %v449 = vsel %vm448, %v440, %v445
        %v450 = vmul.f32 %v425, %v449
        %s451 = scalar_lea.vmem %s279, 112 [#allocation5]
        %452 = vst [vmem:[%s451] sm:$0xff] %v450
        %v453 = vmul.f32 %v427, %v449
        %s454 = scalar_lea.vmem %s279, 128 [#allocation5]
        %455 = vst [vmem:[%s454] sm:$0xff] %v453
        %v456 = vmul.f32 %v429, %v449
        %s457 = scalar_lea.vmem %s279, 144 [#allocation5]
        %458 = vst [vmem:[%s457] sm:$0xff] %v456
        %v459 = vmul.f32 %v431, %v449
        %s460 = scalar_lea.vmem %s279, 160 [#allocation5]
        %461 = vst [vmem:[%s460] sm:$0xff] %v459
        %v462 = vld [vmem:[%s261 + $0x8] sm:$0xff]
        %v463 = vld [vmem:[%s290 + $0x8] sm:$0xff]
        %v464 = vld [vmem:[%s292 + $0x8] sm:$0xff]
        %v465 = vld [vmem:[%s294 + $0x8] sm:$0xff]
        %v466 = vsub.f32 %v462, %v296
        %v467 = vsub.f32 %v463, %v298
        %v468 = vsub.f32 %v464, %v300
        %v469 = vmul.f32 %v466, %v466
        %v470 = vmul.f32 %v467, %v467
        %v471 = vadd.f32 %v469, %v470
        %v472 = vmul.f32 %v468, %v468
        %v473 = vadd.f32 %v471, %v472
        %v474 = vadd.f32 %v473, 1e-12
        %v475 = vrsqrt.pop %v474
        %v476 = vmul.f32 %v475, %v474
        %v477 = vmul.f32 %v476, %v475
        %v478 = vmul.f32 0.5, %v477
        %v479 = vsub.f32 1.5, %v478
        %v480 = vmul.f32 %v475, %v479
        %vm481 = vweird.f32 %v474
        %vm482 = vweird.f32 %v475
        %vm483 = vmor %vm481, %vm482
        %v484 = vsel %vm483, %v475, %v480
        %v485 = vmul.f32 %v466, %v484
        %v486 = vmul.f32 %v467, %v484
        %v487 = vmul.f32 %v468, %v484
        %v488 = vmul.f32 %v485, %v321
        %v489 = vmul.f32 %v486, %v323
        %v490 = vadd.f32 %v488, %v489
        %v491 = vmul.f32 %v487, %v326
        %v492 = vadd.f32 %v490, %v491
        %v493 = vsub.f32 0.0, %v492
        %v494 = vmul.f32 %v465, %v465
        %v495 = vmul.f32 %v493, %v493
        %v496 = vsub.f32 1.0, %v495
        %v497 = vmul.f32 %v494, %v496
        %vm498 = vcmp.gt.f32.partialorder %v497, 1.0
        %v499 = vsub.f32 1.0, %v497
        %v500 = vmax.f32 %v499, 0.0
        %v501 = vrsqrt.pop %v500
        %v502 = vmul.f32 %v501, %v500
        %v503 = vmul.f32 %v502, %v501
        %v504 = vmul.f32 0.5, %v503
        %v505 = vsub.f32 1.5, %v504
        %v506 = vmul.f32 %v501, %v505
        %v507 = vmul.f32 %v500, %v506
        %vm508 = vcmp.eq.f32.partialorder %v500, inf
        %v509 = vsel %vm508, %v500, %v507
        %vm510 = vcmp.eq.f32.partialorder %v500, 0.0
        %v511 = vand.u32 %v500, 2147483648
        %v512 = vsel %vm510, %v511, %v509
        %v513 = vmul.f32 %v465, %v493
        %v514 = vsub.f32 %v513, %v512
        %v515 = vmul.f32 %v465, %v485
        %v516 = vmul.f32 %v514, %v321
        %v517 = vadd.f32 %v515, %v516
        %v518 = vsel %vm498, %v485, %v517
        %v519 = vmul.f32 %v465, %v486
        %v520 = vmul.f32 %v514, %v323
        %v521 = vadd.f32 %v519, %v520
        %v522 = vsel %vm498, %v486, %v521
        %v523 = vmul.f32 %v465, %v487
        %v524 = vmul.f32 %v514, %v326
        %v525 = vadd.f32 %v523, %v524
        %v526 = vsel %vm498, %v487, %v525
        %v527 = vmul.f32 %v518, %v321
        %v528 = vmul.f32 %v522, %v323
        %v529 = vadd.f32 %v527, %v528
        %v530 = vmul.f32 %v526, %v326
        %v531 = vadd.f32 %v529, %v530
        %v532 = vmax.f32 %v531, 1e-06
        %v533 = vrcp.pop %v532
        %v534 = vmul.f32 %v370, %v533
        %v535 = vmul.f32 %v518, %v534
        %v536 = vadd.f32 %v296, %v535
        %537 = vst [vmem:[%s279 + $0x8] sm:$0xff] %v536
        %v538 = vmul.f32 %v522, %v534
        %v539 = vadd.f32 %v298, %v538
        %540 = vst [vmem:[%s377 + $0x8] sm:$0xff] %v539
        %v541 = vmul.f32 %v526, %v534
        %v542 = vadd.f32 %v300, %v541
        %543 = vst [vmem:[%s381 + $0x8] sm:$0xff] %v542
        %v544 = vld [vmem:[%s383 + $0x8] sm:$0xff]
        %v545 = vxor.u32 %v544, 2147483648
        %v546 = vmul.f32 %v545, 1.442695
        %v547 = vpow.pop %v546
        %v548 = vadd.f32 %v547, 1.0
        %v549 = vrcp.pop %v548
        %v550 = vmul.f32 %v548, %v549
        %v551 = vsub.f32 1.0, %v550
        %v552 = vmul.f32 %v549, %v551
        %v553 = vadd.f32 %v549, %v552
        %vm554 = vweird.f32 %v548
        %vm555 = vweird.f32 %v549
        %vm556 = vmor %vm554, %vm555
        %v557 = vsel %vm556, %v549, %v553
        %v558 = vand.u32 2147483647, %v548
        %vm559 = vcmp.eq.f32.partialorder %v558, 8.507059e+37
        %v560 = vand.u32 %v548, 2147483648
        %v561 = vor.u32 1.1754944e-38, %v560
        %v562 = vsel %vm559, %v561, %v557
        %v563 = vmul.f32 1.0, %v562
        %564 = vst [vmem:[%s404 + $0x8] sm:$0xff] %v563
        %v565 = vld [vmem:[%s406 + $0x8] sm:$0xff]
        %v566 = vmul.f32 %v565, 1.442695
        %v567 = vpow.pop %v566
        %568 = vst [vmem:[%s410 + $0x8] sm:$0xff] %v567
        %v569 = vld [vmem:[%s412 + $0x8] sm:$0xff]
        %v570 = vmul.f32 %v569, 1.442695
        %v571 = vpow.pop %v570
        %572 = vst [vmem:[%s416 + $0x8] sm:$0xff] %v571
        %v573 = vld [vmem:[%s418 + $0x8] sm:$0xff]
        %v574 = vmul.f32 %v573, 1.442695
        %v575 = vpow.pop %v574
        %576 = vst [vmem:[%s422 + $0x8] sm:$0xff] %v575
        %v577 = vld [vmem:[%s424 + $0x8] sm:$0xff]
        %v578 = vld [vmem:[%s426 + $0x8] sm:$0xff]
        %v579 = vld [vmem:[%s428 + $0x8] sm:$0xff]
        %v580 = vld [vmem:[%s430 + $0x8] sm:$0xff]
        %v581 = vmul.f32 %v577, %v577
        %v582 = vmul.f32 %v578, %v578
        %v583 = vadd.f32 %v581, %v582
        %v584 = vmul.f32 %v579, %v579
        %v585 = vadd.f32 %v583, %v584
        %v586 = vmul.f32 %v580, %v580
        %v587 = vadd.f32 %v585, %v586
        %v588 = vadd.f32 %v587, 1e-12
        %v589 = vrsqrt.pop %v588
        %v590 = vmul.f32 %v589, %v588
        %v591 = vmul.f32 %v590, %v589
        %v592 = vmul.f32 0.5, %v591
        %v593 = vsub.f32 1.5, %v592
        %v594 = vmul.f32 %v589, %v593
        %vm595 = vweird.f32 %v588
        %vm596 = vweird.f32 %v589
        %vm597 = vmor %vm595, %vm596
        %v598 = vsel %vm597, %v589, %v594
        %v599 = vmul.f32 %v577, %v598
        %600 = vst [vmem:[%s451 + $0x8] sm:$0xff] %v599
        %v601 = vmul.f32 %v578, %v598
        %602 = vst [vmem:[%s454 + $0x8] sm:$0xff] %v601
        %v603 = vmul.f32 %v579, %v598
        %604 = vst [vmem:[%s457 + $0x8] sm:$0xff] %v603
        %v605 = vmul.f32 %v580, %v598
        %606 = vst [vmem:[%s460 + $0x8] sm:$0xff] %v605
        %s607 = sand.u32 %s69, 1
        %s608 = sand.u32 %s69, 1
        %s609 = smul.addr %s608, 176
        %s610 = scalar_lea.vmem [#allocation5], %s609
        // Predicated region
        $region71: #{gaussian_forward_pallas.1} parent=61 // pred_check
          %p611 = pneg %p79
        $region72: #{gaussian_forward_pallas.1} parent=61 // pred_check_branch
          %613 = sbr.rel (%p611) target = $region74
        $region73: #{gaussian_forward_pallas.1} parent=61 // pred_region
          %s614 = smul.u32 2, %s14
          %s615 = smul.addr %s614, 8
          %s616 = scalar_lea.vmem %s2, %s615
          // Predicated region
          $region75: #{gaussian_forward_pallas.1} parent=73 // pred_check
            _
          $region76: #{gaussian_forward_pallas.1} parent=73 // pred_check_branch
            %618 = sbr.rel (0) target = $region78
          $region77: #{gaussian_forward_pallas.1} parent=73 // pred_region
            // Predicated region
            $region79: #{gaussian_forward_pallas.1} parent=77 // pred_check
              _
            $region80: #{gaussian_forward_pallas.1} parent=77 // pred_check_branch
              %620 = sbr.rel (0) target = $region82
            $region81: #{gaussian_forward_pallas.1} parent=77 // pred_region
              // Predicated region
              $region94: #{gaussian_forward_pallas.1} parent=81 // pred_check
                _
              $region95: #{gaussian_forward_pallas.1} parent=81 // pred_check_branch
                %678 = sbr.rel (0) target = $region97
              $region96: #{gaussian_forward_pallas.1} parent=81 // pred_region
                loop: start=0, step=1, limit=1
                $region98: #{gaussian_forward_pallas.1} parent=96 // loop_pre_header
                  _
                $region99: #{gaussian_forward_pallas.1} parent=96 // loop_header
                  %s680 = sphi 0, %s684
                  %p681 = scmp.ge.s32.totalorder %s680, 1
                  %s685 = sphi %s610, %s610
                  %s686 = sphi %s616, %s616
                $region100: #{gaussian_forward_pallas.1} parent=96 // loop_header_branch
                  %683 = sbr.rel (%p681) target = $region104
                $region101: #{gaussian_forward_pallas.1} parent=96 // loop_body
                  %v687 = vld [vmem:[%s685] sm:$0xff]
                  %688 = vst [vmem:[%s686] sm:$0xff] %v687
                  %v689 = vld [vmem:[%s685 + $0x8] sm:$0xff]
                  %690 = vst [vmem:[%s686 + $0x8] sm:$0xff] %v689
                  %v691 = vld [vmem:[%s685 + $0x10] sm:$0xff]
                  %692 = vst [vmem:[%s686 + $0x20] sm:$0xff] %v691
                  %v693 = vld [vmem:[%s685 + $0x18] sm:$0xff]
                  %694 = vst [vmem:[%s686 + $0x28] sm:$0xff] %v693
                  %v695 = vld [vmem:[%s685 + $0x20] sm:$0xff]
                  %696 = vst [vmem:[%s686 + $0x40] sm:$0xff] %v695
                  %v697 = vld [vmem:[%s685 + $0x28] sm:$0xff]
                  %698 = vst [vmem:[%s686 + $0x48] sm:$0xff] %v697
                  %v699 = vld [vmem:[%s685 + $0x30] sm:$0xff]
                  %700 = vst [vmem:[%s686 + $0x60] sm:$0xff] %v699
                  %v701 = vld [vmem:[%s685 + $0x38] sm:$0xff]
                  %702 = vst [vmem:[%s686 + $0x68] sm:$0xff] %v701
                  %v703 = vld [vmem:[%s685 + $0x40] sm:$0xff]
                  %704 = vst [vmem:[%s686 + $0x80] sm:$0xff] %v703
                  %v705 = vld [vmem:[%s685 + $0x48] sm:$0xff]
                  %706 = vst [vmem:[%s686 + $0x88] sm:$0xff] %v705
                  %v707 = vld [vmem:[%s685 + $0x50] sm:$0xff]
                  %708 = vst [vmem:[%s686 + $0xa0] sm:$0xff] %v707
                  %v709 = vld [vmem:[%s685 + $0x58] sm:$0xff]
                  %710 = vst [vmem:[%s686 + $0xa8] sm:$0xff] %v709
                  %v711 = vld [vmem:[%s685 + $0x60] sm:$0xff]
                  %712 = vst [vmem:[%s686 + $0xc0] sm:$0xff] %v711
                  %v713 = vld [vmem:[%s685 + $0x68] sm:$0xff]
                  %714 = vst [vmem:[%s686 + $0xc8] sm:$0xff] %v713
                  %v715 = vld [vmem:[%s685 + $0x70] sm:$0xff]
                  %716 = vst [vmem:[%s686 + $0xe0] sm:$0xff] %v715
                  %v717 = vld [vmem:[%s685 + $0x78] sm:$0xff]
                  %718 = vst [vmem:[%s686 + $0xe8] sm:$0xff] %v717
                  %v719 = vld [vmem:[%s685 + $0x80] sm:$0xff]
                  %720 = vst [vmem:[%s686 + $0x100] sm:$0xff] %v719
                  %v721 = vld [vmem:[%s685 + $0x88] sm:$0xff]
                  %722 = vst [vmem:[%s686 + $0x108] sm:$0xff] %v721
                  %v723 = vld [vmem:[%s685 + $0x90] sm:$0xff]
                  %724 = vst [vmem:[%s686 + $0x120] sm:$0xff] %v723
                  %v725 = vld [vmem:[%s685 + $0x98] sm:$0xff]
                  %726 = vst [vmem:[%s686 + $0x128] sm:$0xff] %v725
                  %v727 = vld [vmem:[%s685 + $0xa0] sm:$0xff]
                  %728 = vst [vmem:[%s686 + $0x140] sm:$0xff] %v727
                  %v729 = vld [vmem:[%s685 + $0xa8] sm:$0xff]
                  %730 = vst [vmem:[%s686 + $0x148] sm:$0xff] %v729
                $region102: #{gaussian_forward_pallas.1} parent=96 // loop_footer
                  %s684 = sadd.s32 1, %s680
                $region103: #{gaussian_forward_pallas.1} parent=96 // loop_footer_branch
                  %679 = sbr.rel target = $region99
                $region104: #{gaussian_forward_pallas.1} parent=96 // loop_exit
                  _
              $region97: #{gaussian_forward_pallas.1} parent=81 // pred_fallthru
                _
              // Predicated region
              $region105: #{gaussian_forward_pallas.1} parent=81 // pred_check
                _
              $region106: #{gaussian_forward_pallas.1} parent=81 // pred_check_branch
                %732 = sbr.rel target = $region108
              $region107: #{gaussian_forward_pallas.1} parent=81 // pred_region
                _
              $region108: #{gaussian_forward_pallas.1} parent=81 // pred_fallthru
                _
            $region82: #{gaussian_forward_pallas.1} parent=77 // pred_fallthru
              _
            // Predicated region
            $region83: #{gaussian_forward_pallas.1} parent=77 // pred_check
              _
            $region84: #{gaussian_forward_pallas.1} parent=77 // pred_check_branch
              %622 = sbr.rel target = $region86
            $region85: #{gaussian_forward_pallas.1} parent=77 // pred_region
              %s624 = ssub.s32 256, 1
              loop: start=0, step=1, limit=1
              $region87: #{gaussian_forward_pallas.1} parent=85 // loop_pre_header
                _
              $region88: #{gaussian_forward_pallas.1} parent=85 // loop_header
                %s626 = sphi 0, %s630
                %p627 = scmp.ge.s32.totalorder %s626, 1
                %s631 = sphi %s610, %s610
                %s632 = sphi %s616, %s616
              $region89: #{gaussian_forward_pallas.1} parent=85 // loop_header_branch
                %629 = sbr.rel (%p627) target = $region93
              $region90: #{gaussian_forward_pallas.1} parent=85 // loop_body
                %v633 = vld [vmem:[%s631] sm:%s624]
                %634 = vst [vmem:[%s632] sm:%s624] %v633
                %v635 = vld [vmem:[%s631 + $0x8] sm:%s624]
                %636 = vst [vmem:[%s632 + $0x8] sm:%s624] %v635
                %v637 = vld [vmem:[%s631 + $0x10] sm:%s624]
                %638 = vst [vmem:[%s632 + $0x20] sm:%s624] %v637
                %v639 = vld [vmem:[%s631 + $0x18] sm:%s624]
                %640 = vst [vmem:[%s632 + $0x28] sm:%s624] %v639
                %v641 = vld [vmem:[%s631 + $0x20] sm:%s624]
                %642 = vst [vmem:[%s632 + $0x40] sm:%s624] %v641
                %v643 = vld [vmem:[%s631 + $0x28] sm:%s624]
                %644 = vst [vmem:[%s632 + $0x48] sm:%s624] %v643
                %v645 = vld [vmem:[%s631 + $0x30] sm:%s624]
                %646 = vst [vmem:[%s632 + $0x60] sm:%s624] %v645
                %v647 = vld [vmem:[%s631 + $0x38] sm:%s624]
                %648 = vst [vmem:[%s632 + $0x68] sm:%s624] %v647
                %v649 = vld [vmem:[%s631 + $0x40] sm:%s624]
                %650 = vst [vmem:[%s632 + $0x80] sm:%s624] %v649
                %v651 = vld [vmem:[%s631 + $0x48] sm:%s624]
                %652 = vst [vmem:[%s632 + $0x88] sm:%s624] %v651
                %v653 = vld [vmem:[%s631 + $0x50] sm:%s624]
                %654 = vst [vmem:[%s632 + $0xa0] sm:%s624] %v653
                %v655 = vld [vmem:[%s631 + $0x58] sm:%s624]
                %656 = vst [vmem:[%s632 + $0xa8] sm:%s624] %v655
                %v657 = vld [vmem:[%s631 + $0x60] sm:%s624]
                %658 = vst [vmem:[%s632 + $0xc0] sm:%s624] %v657
                %v659 = vld [vmem:[%s631 + $0x68] sm:%s624]
                %660 = vst [vmem:[%s632 + $0xc8] sm:%s624] %v659
                %v661 = vld [vmem:[%s631 + $0x70] sm:%s624]
                %662 = vst [vmem:[%s632 + $0xe0] sm:%s624] %v661
                %v663 = vld [vmem:[%s631 + $0x78] sm:%s624]
                %664 = vst [vmem:[%s632 + $0xe8] sm:%s624] %v663
                %v665 = vld [vmem:[%s631 + $0x80] sm:%s624]
                %666 = vst [vmem:[%s632 + $0x100] sm:%s624] %v665
                %v667 = vld [vmem:[%s631 + $0x88] sm:%s624]
                %668 = vst [vmem:[%s632 + $0x108] sm:%s624] %v667
                %v669 = vld [vmem:[%s631 + $0x90] sm:%s624]
                %670 = vst [vmem:[%s632 + $0x120] sm:%s624] %v669
                %v671 = vld [vmem:[%s631 + $0x98] sm:%s624]
                %672 = vst [vmem:[%s632 + $0x128] sm:%s624] %v671
                %v673 = vld [vmem:[%s631 + $0xa0] sm:%s624]
                %674 = vst [vmem:[%s632 + $0x140] sm:%s624] %v673
                %v675 = vld [vmem:[%s631 + $0xa8] sm:%s624]
                %676 = vst [vmem:[%s632 + $0x148] sm:%s624] %v675
              $region91: #{gaussian_forward_pallas.1} parent=85 // loop_footer
                %s630 = sadd.s32 1, %s626
              $region92: #{gaussian_forward_pallas.1} parent=85 // loop_footer_branch
                %625 = sbr.rel target = $region88
              $region93: #{gaussian_forward_pallas.1} parent=85 // loop_exit
                _
            $region86: #{gaussian_forward_pallas.1} parent=77 // pred_fallthru
              _
          $region78: #{gaussian_forward_pallas.1} parent=73 // pred_fallthru
            _
          %733 = vnop
        $region74: #{gaussian_forward_pallas.1} parent=61 // pred_fallthru
          _
      $region62: #{gaussian_forward_pallas.1} parent=5 // pred_fallthru
        _
      %p734 = scmp.le.s32.totalorder 2, %s9
      // Predicated region
      $region109: #{gaussian_forward_pallas.1} parent=5 // pred_check
        %p735 = pneg %p734
      $region110: #{gaussian_forward_pallas.1} parent=5 // pred_check_branch
        %737 = sbr.rel (%p735) target = $region112
      $region111: #{gaussian_forward_pallas.1} parent=5 // pred_region
        %s738 = ssub.s32 %s9, 2
        // Predicated region
        $region113: #{gaussian_forward_pallas.1} parent=111 // pred_check
          %p739 = pneg %p85
        $region114: #{gaussian_forward_pallas.1} parent=111 // pred_check_branch
          %741 = sbr.rel (%p739) target = $region116
        $region115: #{gaussian_forward_pallas.1} parent=111 // pred_region
          %s742 = sand.u32 %s70, 1
          %s743 = sand.u32 %s70, 1
          %s744 = smul.addr %s743, 176
          %s745 = scalar_lea.vmem [#allocation5], %s744
        $region116: #{gaussian_forward_pallas.1} parent=111 // pred_fallthru
          _
      $region112: #{gaussian_forward_pallas.1} parent=5 // pred_fallthru
        _
    $region6: #{gaussian_forward_pallas.1} parent=1 // loop_footer
      %s13 = sadd.s32 1, %s9
    $region7: #{gaussian_forward_pallas.1} parent=1 // loop_footer_branch
      %8 = sbr.rel target = $region3
    $region8: #{gaussian_forward_pallas.1} parent=1 // loop_exit
      _
    %746 = vsyncpa [#allocation3], 1
    %s747 = scalar_lea.sflag [#allocation3], 1
    %748 = vsyncpa %s747, 1

</llo_original>
